<compile_context>
chip_gen: v7x
topology: tpu7x:2x2x1
jax: 0.10.0
libtpu: 0.0.40
codegen_flags: <defaults>
</compile_context>

<pallas_src>
import numpy as np
import jax
import jax.numpy as jnp
from jax import lax
from jax.experimental import pallas as pl
from jax.experimental.pallas import tpu as pltpu

# ---------------- sizes (small, consistent with the module) -----------------
B, S, D = 2, 8, 32          # batch, seq_length, embeddings_dim
H, DH = 4, 8                # attention heads, head dim (D = H * DH)
I = 64                      # MLP intermediate size
M = 128                     # memory-bank entries
N = B * S                   # folded token axis
RMS_EPS = 1e-6              # Llama rms_norm_eps
NORM_EPS = 1e-4             # "+ 0.0001" from _normed()


# ------------------------ fused forward kernel -------------------------------
def fused_kernel(hs_ref, mem_ref, gate_ref, ln1_ref, ln2_ref,
                 wq_ref, wk_ref, wv_ref, wo_ref, wg_ref, wu_ref, wd_ref,
                 rot_ref, cos_ref, sin_ref, hmask_ref, bias_ref, out_ref):
    f32 = jnp.float32
    x = hs_ref[...]                                   # (N, D) f32
    mem = mem_ref[...]                                # (M, D) f32

    # ---- _extract_from_memory: nearest neighbour, first-index tie-break ----
    sim = lax.dot_general(x, mem, (((1,), (1,)), ((), ())),
                          preferred_element_type=f32)            # (N, M)
    best = jnp.max(sim, axis=-1, keepdims=True)
    col = lax.broadcasted_iota(jnp.int32, sim.shape, 1).astype(f32)
    cand = jnp.where(sim >= best, col, float(M))
    first = jnp.min(cand, axis=-1, keepdims=True)
    onehot = (col == first).astype(f32)                          # exact one-hot
    retrieved = jnp.dot(onehot, mem, preferred_element_type=f32)  # (N, D)

    # ---- _normed() on local & memory, context gate, rescale by local norm --
    norm = jnp.sqrt(jnp.sum(x * x, axis=-1, keepdims=True)) + NORM_EPS
    xn = x * pl.reciprocal(norm, approx=True)
    mnorm = jnp.sqrt(jnp.sum(retrieved * retrieved, axis=-1, keepdims=True)) + NORM_EPS
    mn = retrieved * pl.reciprocal(mnorm, approx=True)
    g = jax.nn.sigmoid(gate_ref[...])                            # (1, D)
    x_mix = (g * xn + (1.0 - g) * mn) * norm                     # (N, D)

    # ---- wrapped LlamaDecoderLayer: input RMSNorm + q/k/v projections -------
    var1 = jnp.mean(x_mix * x_mix, axis=-1, keepdims=True)
    xn1 = x_mix * lax.rsqrt(var1 + RMS_EPS) * ln1_ref[...]
    xb = xn1.astype(jnp.bfloat16)                                # bf16 MXU path
    q = jnp.dot(xb, wq_ref[...], preferred_element_type=f32)     # (N, D)
    k = jnp.dot(xb, wk_ref[...], preferred_element_type=f32)
    v = jnp.dot(xb, wv_ref[...], preferred_element_type=f32)

    # ---- RoPE once, full width; rotate-half via signed-permutation matmul ---
    cos = cos_ref[...]
    sin = sin_ref[...]
    rot = rot_ref[...]
    q = q * cos + jnp.dot(q, rot, preferred_element_type=f32) * sin
    k = k * cos + jnp.dot(k, rot, preferred_element_type=f32) * sin

    # ---- multi-head causal attention, all heads + batches in two einsums ----
    hmask = hmask_ref[...]                                       # (H, 1, D) 0/1
    qh = q[None, :, :] * hmask                                   # (H, N, D)
    kh = k[None, :, :] * hmask
    vh = v[None, :, :] * hmask
    scale = 1.0 / (DH ** 0.5)
    s = jnp.einsum("hqd,hkd->hqk", qh, kh,
                   preferred_element_type=f32) * scale           # (H, N, N)
    s = s + bias_ref[...]                         # block-diag causal (per sample)
    s = s - jnp.max(s, axis=-1, keepdims=True)
    p = jnp.exp(s)
    p = p * pl.reciprocal(jnp.sum(p, axis=-1, keepdims=True), approx=True)
    ctx = jnp.einsum("hqk,hkd->hqd", p, vh,
                     preferred_element_type=f32)                 # (H, N, D)
    ctx = jnp.sum(ctx, axis=0)            # heads land in their own lane slices
    attn = jnp.dot(ctx.astype(jnp.bfloat16), wo_ref[...],
                   preferred_element_type=f32)

    h1 = x_mix + attn                                            # residual 1

    # ---- post-attention RMSNorm + SwiGLU MLP --------------------------------
    var2 = jnp.mean(h1 * h1, axis=-1, keepdims=True)
    h1n = (h1 * lax.rsqrt(var2 + RMS_EPS) * ln2_ref[...]).astype(jnp.bfloat16)
    gp = jnp.dot(h1n, wg_ref[...], preferred_element_type=f32)
    up = jnp.dot(h1n, wu_ref[...], preferred_element_type=f32)
    act = gp * jax.nn.sigmoid(gp)                                # SiLU
    mlp = jnp.dot((act * up).astype(jnp.bfloat16), wd_ref[...],
                  preferred_element_type=f32)

    out_ref[...] = h1 + mlp                                      # residual 2


def memorizing_decoder_layer(x2d, mem_bank, gate, params, consts):
    # Single invocation (grid of 1); everything tiny, fully VMEM-resident.
    # NOTE: at real Llama sizes (D=4096, I=11008) the weights must move to a
    # K-tiled grid axis with an f32 accumulator instead of being resident.
    def full(a):
        shape = a.shape
        n = len(shape)
        return pl.BlockSpec(shape, lambda i, _n=n: (0,) * _n)

    inputs = [x2d, mem_bank, gate,
              params["ln1"], params["ln2"],
              params["wq"], params["wk"], params["wv"], params["wo"],
              params["wg"], params["wu"], params["wd"],
              consts["rot"], consts["cos"], consts["sin"],
              consts["hmask"], consts["bias"]]
    return pl.pallas_call(
        fused_kernel,
        out_shape=jax.ShapeDtypeStruct((N, D), jnp.float32),
        grid=(1,),
        in_specs=[full(a) for a in inputs],
        out_specs=pl.BlockSpec((N, D), lambda i: (0, 0)),
        compiler_params=pltpu.CompilerParams(
            dimension_semantics=("arbitrary",)),
    )(*inputs)


# ----------------------------- glue (plain JAX) ------------------------------
def rotary_tables(seq_len, head_dim, base=10000.0):
    inv_freq = 1.0 / (base ** (jnp.arange(0, head_dim, 2, dtype=jnp.float32) / head_dim))
    pos = jnp.arange(seq_len, dtype=jnp.float32)
    freqs = pos[:, None] * inv_freq[None, :]                 # (S, DH/2)
    emb = jnp.concatenate([freqs, freqs], axis=-1)           # (S, DH)
    return jnp.cos(emb), jnp.sin(emb)


def build_constants():
    cos, sin = rotary_tables(S, DH)                          # (S, DH)
    # one cos/sin table per (batch*token, full hidden width)
    cos_bs = jnp.tile(jnp.tile(cos, (1, H)), (B, 1))         # (N, D)
    sin_bs = jnp.tile(jnp.tile(sin, (1, H)), (B, 1))
    # rotate-half of each per-head block as one signed permutation matrix
    R = np.zeros((D, D), np.float32)
    half = DH // 2
    for h in range(H):
        b0 = h * DH
        for j in range(half):
            R[b0 + half + j, b0 + j] = -1.0                  # out[:, j]      = -t2[j]
            R[b0 + j, b0 + half + j] = 1.0                   # out[:, half+j] =  t1[j]
    # 0/1 head-selection masks, shaped for direct in-kernel broadcasting
    hmask = (np.arange(D)[None, :] // DH ==
             np.arange(H)[:, None]).astype(np.float32).reshape(H, 1, D)
    # block-diagonal (per sample) causal bias over the folded token axis
    idx = np.arange(N)
    same = (idx[:, None] // S) == (idx[None, :] // S)
    causal = idx[None, :] <= idx[:, None]
    bias = np.where(same & causal, 0.0, -1e30).astype(np.float32)   # (N, N)
    return dict(cos=cos_bs, sin=sin_bs, rot=jnp.asarray(R),
                hmask=jnp.asarray(hmask), bias=jnp.asarray(bias))


def add_to_memory(mem_bank, hidden, position_ids):
    # _add_to_memory: circular-buffer write. Vectorized into ONE scatter with
    # explicit "last sample wins" for duplicate slots, matching the reference
    # module's sequential per-sample writes.
    flat_idx = jnp.reshape(position_ids, (-1,)) % M          # (N,)
    flat_val = jnp.reshape(hidden, (N, hidden.shape[-1]))    # (N, D)
    order = jnp.arange(N)
    later_same = (flat_idx[None, :] == flat_idx[:, None]) & (order[None, :] > order[:, None])
    superseded = jnp.any(later_same, axis=1)
    safe_idx = jnp.where(superseded, M, flat_idx)            # M -> out of range
    return mem_bank.at[safe_idx].set(flat_val, mode="drop")


def memorizing_decoder_forward(hidden_states, mem_bank, gate, params,
                               position_ids, consts):
    # retrieval uses the pre-update bank; the add uses the original hidden
    # states (same ordering as the reference forward).
    x2d = hidden_states.reshape(N, D)                        # free reshape
    out2d = memorizing_decoder_layer(x2d, mem_bank, gate, params, consts)
    new_mem = add_to_memory(mem_bank, hidden_states, position_ids)
    return out2d.reshape(B, S, D), new_mem


# ---------------------------------- main -------------------------------------
if __name__ == "__main__":
    key = jax.random.PRNGKey(0)
    ks = jax.random.split(key, 12)

    hidden_states = jax.random.normal(ks[0], (B, S, D), jnp.float32)
    memory_bank = jax.random.normal(ks[1], (M, D), jnp.float32)
    gate = 0.1 * jax.random.normal(ks[2], (1, D), jnp.float32)
    position_ids = jnp.broadcast_to(jnp.arange(S, dtype=jnp.int32), (B, S))

    # projection weights in bf16 (native MXU dtype on v6e/v7x); norms/gate f32
    w = lambda k, shape: (0.05 * jax.random.normal(k, shape, jnp.float32)
                          ).astype(jnp.bfloat16)
    params = dict(
        ln1=jnp.ones((1, D), jnp.float32),
        ln2=jnp.ones((1, D), jnp.float32),
        wq=w(ks[3], (D, D)), wk=w(ks[4], (D, D)),
        wv=w(ks[5], (D, D)), wo=w(ks[6], (D, D)),
        wg=w(ks[7], (D, I)), wu=w(ks[8], (D, I)), wd=w(ks[9], (I, D)),
    )
    consts = build_constants()

    fwd = jax.jit(memorizing_decoder_forward)
    out, new_mem = fwd(hidden_states, memory_bank, gate, params,
                       position_ids, consts)
    jax.block_until_ready(out)
    jax.block_until_ready(new_mem)
    assert out.shape == (B, S, D) and bool(jnp.all(jnp.isfinite(out)))
    assert new_mem.shape == (M, D) and bool(jnp.all(jnp.isfinite(new_mem)))
    print("KERNEL_OK")
</pallas_src>

<mosaic_0001>
module attributes {stable_mosaic.version = 11 : i64} {
  func.func @fused_kernel(%arg0: i32, %arg1: memref<16x32xf32, #tpu.memory_space<vmem>>, %arg2: memref<128x32xf32, #tpu.memory_space<vmem>>, %arg3: memref<1x32xf32, #tpu.memory_space<vmem>>, %arg4: memref<1x32xf32, #tpu.memory_space<vmem>>, %arg5: memref<1x32xf32, #tpu.memory_space<vmem>>, %arg6: memref<32x32xbf16, #tpu.memory_space<vmem>>, %arg7: memref<32x32xbf16, #tpu.memory_space<vmem>>, %arg8: memref<32x32xbf16, #tpu.memory_space<vmem>>, %arg9: memref<32x32xbf16, #tpu.memory_space<vmem>>, %arg10: memref<32x64xbf16, #tpu.memory_space<vmem>>, %arg11: memref<32x64xbf16, #tpu.memory_space<vmem>>, %arg12: memref<64x32xbf16, #tpu.memory_space<vmem>>, %arg13: memref<32x32xf32, #tpu.memory_space<vmem>>, %arg14: memref<16x32xf32, #tpu.memory_space<vmem>>, %arg15: memref<16x32xf32, #tpu.memory_space<vmem>>, %arg16: memref<4x1x32xf32, #tpu.memory_space<vmem>>, %arg17: memref<16x16xf32, #tpu.memory_space<vmem>>, %arg18: memref<16x32xf32, #tpu.memory_space<vmem>>) attributes {dimension_semantics = [#tpu.dimension_semantics<arbitrary>], iteration_bounds = array<i64: 1>, scalar_prefetch = 0 : i64, scratch_operands = 0 : i64, tpu.core_type = #tpu.core_type<tc>, window_params = [{pipeline_mode = #tpu.pipeline_mode<synchronous>, transform_indices = @transform_0, window_bounds = array<i64: 16, 32>}, {pipeline_mode = #tpu.pipeline_mode<synchronous>, transform_indices = @transform_1, window_bounds = array<i64: 128, 32>}, {pipeline_mode = #tpu.pipeline_mode<synchronous>, transform_indices = @transform_2, window_bounds = array<i64: 1, 32>}, {pipeline_mode = #tpu.pipeline_mode<synchronous>, transform_indices = @transform_3, window_bounds = array<i64: 1, 32>}, {pipeline_mode = #tpu.pipeline_mode<synchronous>, transform_indices = @transform_4, window_bounds = array<i64: 1, 32>}, {pipeline_mode = #tpu.pipeline_mode<synchronous>, transform_indices = @transform_5, window_bounds = array<i64: 32, 32>}, {pipeline_mode = #tpu.pipeline_mode<synchronous>, transform_indices = @transform_6, window_bounds = array<i64: 32, 32>}, {pipeline_mode = #tpu.pipeline_mode<synchronous>, transform_indices = @transform_7, window_bounds = array<i64: 32, 32>}, {pipeline_mode = #tpu.pipeline_mode<synchronous>, transform_indices = @transform_8, window_bounds = array<i64: 32, 32>}, {pipeline_mode = #tpu.pipeline_mode<synchronous>, transform_indices = @transform_9, window_bounds = array<i64: 32, 64>}, {pipeline_mode = #tpu.pipeline_mode<synchronous>, transform_indices = @transform_10, window_bounds = array<i64: 32, 64>}, {pipeline_mode = #tpu.pipeline_mode<synchronous>, transform_indices = @transform_11, window_bounds = array<i64: 64, 32>}, {pipeline_mode = #tpu.pipeline_mode<synchronous>, transform_indices = @transform_12, window_bounds = array<i64: 32, 32>}, {pipeline_mode = #tpu.pipeline_mode<synchronous>, transform_indices = @transform_13, window_bounds = array<i64: 16, 32>}, {pipeline_mode = #tpu.pipeline_mode<synchronous>, transform_indices = @transform_14, window_bounds = array<i64: 16, 32>}, {pipeline_mode = #tpu.pipeline_mode<synchronous>, transform_indices = @transform_15, window_bounds = array<i64: 4, 1, 32>}, {pipeline_mode = #tpu.pipeline_mode<synchronous>, transform_indices = @transform_16, window_bounds = array<i64: 16, 16>}, {pipeline_mode = #tpu.pipeline_mode<synchronous>, transform_indices = @transform_17, window_bounds = array<i64: 16, 32>}]} {
    %c0 = arith.constant 0 : index
    %c0_0 = arith.constant 0 : index
    %0 = vector.load %arg1[%c0, %c0_0] : memref<16x32xf32, #tpu.memory_space<vmem>>, vector<16x32xf32>
    %c0_1 = arith.constant 0 : index
    %c0_2 = arith.constant 0 : index
    %1 = vector.load %arg2[%c0_1, %c0_2] : memref<128x32xf32, #tpu.memory_space<vmem>>, vector<128x32xf32>
    %cst = arith.constant dense<0.000000e+00> : vector<16x128xf32>
    %2 = tpu.matmul %0, %1, %cst {dimension_numbers = #tpu.dot_dimension_numbers<[1], [1], [0], [0], [0, 0, 1, 0], [], []>} : vector<16x32xf32>, vector<128x32xf32>, vector<16x128xf32> -> vector<16x128xf32>
    %cst_3 = arith.constant dense<0xFF800000> : vector<16xf32>
    %3 = vector.multi_reduction <maximumf>, %2, %cst_3 [1] : vector<16x128xf32> to vector<16xf32>
    %4 = vector.shape_cast %3 : vector<16xf32> to vector<16x1xf32>
    %5 = tpu.iota {dimensions = array<i32: 1>} : vector<16x128xi32>
    %6 = arith.sitofp %5 : vector<16x128xi32> to vector<16x128xf32>
    %7 = vector.broadcast %4 : vector<16x1xf32> to vector<16x128xf32>
    %8 = arith.cmpf oge, %2, %7 : vector<16x128xf32>
    %cst_4 = arith.constant 1.280000e+02 : f32
    %9 = vector.broadcast %cst_4 : f32 to vector<16x128xf32>
    %10 = arith.select %8, %6, %9 : vector<16x128xi1>, vector<16x128xf32>
    %cst_5 = arith.constant dense<0x7F800000> : vector<16xf32>
    %11 = vector.multi_reduction <minimumf>, %10, %cst_5 [1] : vector<16x128xf32> to vector<16xf32>
    %12 = vector.shape_cast %11 : vector<16xf32> to vector<16x1xf32>
    %13 = vector.broadcast %12 : vector<16x1xf32> to vector<16x128xf32>
    %14 = arith.cmpf oeq, %6, %13 : vector<16x128xf32>
    %15 = arith.extui %14 : vector<16x128xi1> to vector<16x128xi32>
    %16 = arith.sitofp %15 : vector<16x128xi32> to vector<16x128xf32>
    %cst_6 = arith.constant dense<0.000000e+00> : vector<16x32xf32>
    %17 = tpu.matmul %16, %1, %cst_6 {dimension_numbers = #tpu.dot_dimension_numbers<[1], [0], [0], [1], [0, 0, 1, 1], [], []>} : vector<16x128xf32>, vector<128x32xf32>, vector<16x32xf32> -> vector<16x32xf32>
    %18 = arith.mulf %0, %0 : vector<16x32xf32>
    %cst_7 = arith.constant dense<0.000000e+00> : vector<16xf32>
    %19 = vector.multi_reduction <add>, %18, %cst_7 [1] : vector<16x32xf32> to vector<16xf32>
    %20 = vector.shape_cast %19 : vector<16xf32> to vector<16x1xf32>
    %21 = math.sqrt %20 : vector<16x1xf32>
    %cst_8 = arith.constant 9.99999974E-5 : f32
    %22 = vector.broadcast %cst_8 : f32 to vector<16x1xf32>
    %23 = arith.addf %21, %22 : vector<16x1xf32>
    %24 = tpu.reciprocal %23 {approx = true} : vector<16x1xf32> -> vector<16x1xf32>
    %25 = vector.broadcast %24 : vector<16x1xf32> to vector<16x32xf32>
    %26 = arith.mulf %0, %25 : vector<16x32xf32>
    %27 = arith.mulf %17, %17 : vector<16x32xf32>
    %cst_9 = arith.constant dense<0.000000e+00> : vector<16xf32>
    %28 = vector.multi_reduction <add>, %27, %cst_9 [1] : vector<16x32xf32> to vector<16xf32>
    %29 = vector.shape_cast %28 : vector<16xf32> to vector<16x1xf32>
    %30 = math.sqrt %29 : vector<16x1xf32>
    %cst_10 = arith.constant 9.99999974E-5 : f32
    %31 = vector.broadcast %cst_10 : f32 to vector<16x1xf32>
    %32 = arith.addf %30, %31 : vector<16x1xf32>
    %33 = tpu.reciprocal %32 {approx = true} : vector<16x1xf32> -> vector<16x1xf32>
    %34 = vector.broadcast %33 : vector<16x1xf32> to vector<16x32xf32>
    %35 = arith.mulf %17, %34 : vector<16x32xf32>
    %c0_11 = arith.constant 0 : index
    %c0_12 = arith.constant 0 : index
    %36 = vector.load %arg3[%c0_11, %c0_12] : memref<1x32xf32, #tpu.memory_space<vmem>>, vector<1x32xf32>
    %37 = arith.negf %36 : vector<1x32xf32>
    %38 = math.exp %37 : vector<1x32xf32>
    %cst_13 = arith.constant 1.000000e+00 : f32
    %39 = vector.broadcast %cst_13 : f32 to vector<1x32xf32>
    %40 = arith.addf %39, %38 : vector<1x32xf32>
    %41 = arith.divf %39, %40 : vector<1x32xf32>
    %42 = vector.broadcast %41 : vector<1x32xf32> to vector<16x32xf32>
    %43 = arith.mulf %42, %26 : vector<16x32xf32>
    %cst_14 = arith.constant 1.000000e+00 : f32
    %44 = vector.broadcast %cst_14 : f32 to vector<1x32xf32>
    %45 = arith.subf %44, %41 : vector<1x32xf32>
    %46 = vector.broadcast %45 : vector<1x32xf32> to vector<16x32xf32>
    %47 = arith.mulf %46, %35 : vector<16x32xf32>
    %48 = arith.addf %43, %47 : vector<16x32xf32>
    %49 = vector.broadcast %23 : vector<16x1xf32> to vector<16x32xf32>
    %50 = arith.mulf %48, %49 : vector<16x32xf32>
    %51 = arith.mulf %50, %50 : vector<16x32xf32>
    %cst_15 = arith.constant dense<0.000000e+00> : vector<16xf32>
    %52 = vector.multi_reduction <add>, %51, %cst_15 [1] : vector<16x32xf32> to vector<16xf32>
    %53 = vector.shape_cast %52 : vector<16xf32> to vector<16x1xf32>
    %cst_16 = arith.constant 3.200000e+01 : f32
    %54 = vector.broadcast %cst_16 : f32 to vector<16x1xf32>
    %55 = arith.divf %53, %54 : vector<16x1xf32>
    %cst_17 = arith.constant 9.99999997E-7 : f32
    %56 = vector.broadcast %cst_17 : f32 to vector<16x1xf32>
    %57 = arith.addf %55, %56 : vector<16x1xf32>
    %58 = math.rsqrt %57 : vector<16x1xf32>
    %59 = vector.broadcast %58 : vector<16x1xf32> to vector<16x32xf32>
    %60 = arith.mulf %50, %59 : vector<16x32xf32>
    %c0_18 = arith.constant 0 : index
    %c0_19 = arith.constant 0 : index
    %61 = vector.load %arg4[%c0_18, %c0_19] : memref<1x32xf32, #tpu.memory_space<vmem>>, vector<1x32xf32>
    %62 = vector.broadcast %61 : vector<1x32xf32> to vector<16x32xf32>
    %63 = arith.mulf %60, %62 : vector<16x32xf32>
    %64 = arith.truncf %63 : vector<16x32xf32> to vector<16x32xbf16>
    %c0_20 = arith.constant 0 : index
    %c0_21 = arith.constant 0 : index
    %65 = vector.load %arg6[%c0_20, %c0_21] : memref<32x32xbf16, #tpu.memory_space<vmem>>, vector<32x32xbf16>
    %cst_22 = arith.constant dense<0.000000e+00> : vector<16x32xf32>
    %66 = tpu.matmul %64, %65, %cst_22 {dimension_numbers = #tpu.dot_dimension_numbers<[1], [0], [0], [1], [0, 0, 1, 1], [], []>} : vector<16x32xbf16>, vector<32x32xbf16>, vector<16x32xf32> -> vector<16x32xf32>
    %c0_23 = arith.constant 0 : index
    %c0_24 = arith.constant 0 : index
    %67 = vector.load %arg7[%c0_23, %c0_24] : memref<32x32xbf16, #tpu.memory_space<vmem>>, vector<32x32xbf16>
    %cst_25 = arith.constant dense<0.000000e+00> : vector<16x32xf32>
    %68 = tpu.matmul %64, %67, %cst_25 {dimension_numbers = #tpu.dot_dimension_numbers<[1], [0], [0], [1], [0, 0, 1, 1], [], []>} : vector<16x32xbf16>, vector<32x32xbf16>, vector<16x32xf32> -> vector<16x32xf32>
    %c0_26 = arith.constant 0 : index
    %c0_27 = arith.constant 0 : index
    %69 = vector.load %arg8[%c0_26, %c0_27] : memref<32x32xbf16, #tpu.memory_space<vmem>>, vector<32x32xbf16>
    %cst_28 = arith.constant dense<0.000000e+00> : vector<16x32xf32>
    %70 = tpu.matmul %64, %69, %cst_28 {dimension_numbers = #tpu.dot_dimension_numbers<[1], [0], [0], [1], [0, 0, 1, 1], [], []>} : vector<16x32xbf16>, vector<32x32xbf16>, vector<16x32xf32> -> vector<16x32xf32>
    %c0_29 = arith.constant 0 : index
    %c0_30 = arith.constant 0 : index
    %71 = vector.load %arg14[%c0_29, %c0_30] : memref<16x32xf32, #tpu.memory_space<vmem>>, vector<16x32xf32>
    %c0_31 = arith.constant 0 : index
    %c0_32 = arith.constant 0 : index
    %72 = vector.load %arg15[%c0_31, %c0_32] : memref<16x32xf32, #tpu.memory_space<vmem>>, vector<16x32xf32>
    %c0_33 = arith.constant 0 : index
    %c0_34 = arith.constant 0 : index
    %73 = vector.load %arg13[%c0_33, %c0_34] : memref<32x32xf32, #tpu.memory_space<vmem>>, vector<32x32xf32>
    %74 = arith.mulf %66, %71 : vector<16x32xf32>
    %cst_35 = arith.constant dense<0.000000e+00> : vector<16x32xf32>
    %75 = tpu.matmul %66, %73, %cst_35 {dimension_numbers = #tpu.dot_dimension_numbers<[1], [0], [0], [1], [0, 0, 1, 1], [], []>} : vector<16x32xf32>, vector<32x32xf32>, vector<16x32xf32> -> vector<16x32xf32>
    %76 = arith.mulf %75, %72 : vector<16x32xf32>
    %77 = arith.addf %74, %76 : vector<16x32xf32>
    %78 = arith.mulf %68, %71 : vector<16x32xf32>
    %cst_36 = arith.constant dense<0.000000e+00> : vector<16x32xf32>
    %79 = tpu.matmul %68, %73, %cst_36 {dimension_numbers = #tpu.dot_dimension_numbers<[1], [0], [0], [1], [0, 0, 1, 1], [], []>} : vector<16x32xf32>, vector<32x32xf32>, vector<16x32xf32> -> vector<16x32xf32>
    %80 = arith.mulf %79, %72 : vector<16x32xf32>
    %81 = arith.addf %78, %80 : vector<16x32xf32>
    %c0_37 = arith.constant 0 : index
    %c0_38 = arith.constant 0 : index
    %c0_39 = arith.constant 0 : index
    %82 = vector.load %arg16[%c0_37, %c0_38, %c0_39] : memref<4x1x32xf32, #tpu.memory_space<vmem>>, vector<4x1x32xf32>
    %83 = vector.shape_cast %77 : vector<16x32xf32> to vector<1x16x32xf32>
    %84 = vector.broadcast %83 : vector<1x16x32xf32> to vector<4x16x32xf32>
    %85 = vector.broadcast %82 : vector<4x1x32xf32> to vector<4x16x32xf32>
    %86 = arith.mulf %84, %85 : vector<4x16x32xf32>
    %87 = vector.shape_cast %81 : vector<16x32xf32> to vector<1x16x32xf32>
    %88 = vector.broadcast %87 : vector<1x16x32xf32> to vector<4x16x32xf32>
    %89 = vector.broadcast %82 : vector<4x1x32xf32> to vector<4x16x32xf32>
    %90 = arith.mulf %88, %89 : vector<4x16x32xf32>
    %91 = vector.shape_cast %70 : vector<16x32xf32> to vector<1x16x32xf32>
    %92 = vector.broadcast %91 : vector<1x16x32xf32> to vector<4x16x32xf32>
    %93 = vector.broadcast %82 : vector<4x1x32xf32> to vector<4x16x32xf32>
    %94 = arith.mulf %92, %93 : vector<4x16x32xf32>
    "tpu.trace_start"() <{level = 10 : i32, message = "hqd,hkd->hqk"}> : () -> ()
    %cst_40 = arith.constant dense<0.000000e+00> : vector<4x16x16xf32>
    %95 = tpu.matmul %86, %90, %cst_40 {dimension_numbers = #tpu.dot_dimension_numbers<[2], [2], [1], [1], [0, 0, 0, 1, 1, 1], [0], [0]>} : vector<4x16x32xf32>, vector<4x16x32xf32>, vector<4x16x16xf32> -> vector<4x16x16xf32>
    "tpu.trace_stop"() : () -> ()
    %cst_41 = arith.constant 0.353553385 : f32
    %96 = vector.broadcast %cst_41 : f32 to vector<4x16x16xf32>
    %97 = arith.mulf %95, %96 : vector<4x16x16xf32>
    %c0_42 = arith.constant 0 : index
    %c0_43 = arith.constant 0 : index
    %98 = vector.load %arg17[%c0_42, %c0_43] : memref<16x16xf32, #tpu.memory_space<vmem>>, vector<16x16xf32>
    %99 = vector.shape_cast %98 : vector<16x16xf32> to vector<1x16x16xf32>
    %100 = vector.broadcast %99 : vector<1x16x16xf32> to vector<4x16x16xf32>
    %101 = arith.addf %97, %100 : vector<4x16x16xf32>
    %cst_44 = arith.constant dense<0xFF800000> : vector<4x16xf32>
    %102 = vector.multi_reduction <maximumf>, %101, %cst_44 [2] : vector<4x16x16xf32> to vector<4x16xf32>
    %103 = vector.shape_cast %102 : vector<4x16xf32> to vector<4x16x1xf32>
    %104 = vector.broadcast %103 : vector<4x16x1xf32> to vector<4x16x16xf32>
    %105 = arith.subf %101, %104 : vector<4x16x16xf32>
    %106 = math.exp %105 : vector<4x16x16xf32>
    %cst_45 = arith.constant dense<0.000000e+00> : vector<4x16xf32>
    %107 = vector.multi_reduction <add>, %106, %cst_45 [2] : vector<4x16x16xf32> to vector<4x16xf32>
    %108 = vector.shape_cast %107 : vector<4x16xf32> to vector<4x16x1xf32>
    %109 = tpu.reciprocal %108 {approx = true} : vector<4x16x1xf32> -> vector<4x16x1xf32>
    %110 = vector.broadcast %109 : vector<4x16x1xf32> to vector<4x16x16xf32>
    %111 = arith.mulf %106, %110 : vector<4x16x16xf32>
    "tpu.trace_start"() <{level = 10 : i32, message = "hqk,hkd->hqd"}> : () -> ()
    %cst_46 = arith.constant dense<0.000000e+00> : vector<4x16x32xf32>
    %112 = tpu.matmul %111, %94, %cst_46 {dimension_numbers = #tpu.dot_dimension_numbers<[2], [1], [1], [2], [0, 0, 0, 1, 1, 2], [0], [0]>} : vector<4x16x16xf32>, vector<4x16x32xf32>, vector<4x16x32xf32> -> vector<4x16x32xf32>
    "tpu.trace_stop"() : () -> ()
    %cst_47 = arith.constant dense<0.000000e+00> : vector<16x32xf32>
    %113 = vector.multi_reduction <add>, %112, %cst_47 [0] : vector<4x16x32xf32> to vector<16x32xf32>
    %114 = arith.truncf %113 : vector<16x32xf32> to vector<16x32xbf16>
    %c0_48 = arith.constant 0 : index
    %c0_49 = arith.constant 0 : index
    %115 = vector.load %arg9[%c0_48, %c0_49] : memref<32x32xbf16, #tpu.memory_space<vmem>>, vector<32x32xbf16>
    %cst_50 = arith.constant dense<0.000000e+00> : vector<16x32xf32>
    %116 = tpu.matmul %114, %115, %cst_50 {dimension_numbers = #tpu.dot_dimension_numbers<[1], [0], [0], [1], [0, 0, 1, 1], [], []>} : vector<16x32xbf16>, vector<32x32xbf16>, vector<16x32xf32> -> vector<16x32xf32>
    %117 = arith.addf %50, %116 : vector<16x32xf32>
    %118 = arith.mulf %117, %117 : vector<16x32xf32>
    %cst_51 = arith.constant dense<0.000000e+00> : vector<16xf32>
    %119 = vector.multi_reduction <add>, %118, %cst_51 [1] : vector<16x32xf32> to vector<16xf32>
    %120 = vector.shape_cast %119 : vector<16xf32> to vector<16x1xf32>
    %cst_52 = arith.constant 3.200000e+01 : f32
    %121 = vector.broadcast %cst_52 : f32 to vector<16x1xf32>
    %122 = arith.divf %120, %121 : vector<16x1xf32>
    %cst_53 = arith.constant 9.99999997E-7 : f32
    %123 = vector.broadcast %cst_53 : f32 to vector<16x1xf32>
    %124 = arith.addf %122, %123 : vector<16x1xf32>
    %125 = math.rsqrt %124 : vector<16x1xf32>
    %126 = vector.broadcast %125 : vector<16x1xf32> to vector<16x32xf32>
    %127 = arith.mulf %117, %126 : vector<16x32xf32>
    %c0_54 = arith.constant 0 : index
    %c0_55 = arith.constant 0 : index
    %128 = vector.load %arg5[%c0_54, %c0_55] : memref<1x32xf32, #tpu.memory_space<vmem>>, vector<1x32xf32>
    %129 = vector.broadcast %128 : vector<1x32xf32> to vector<16x32xf32>
    %130 = arith.mulf %127, %129 : vector<16x32xf32>
    %131 = arith.truncf %130 : vector<16x32xf32> to vector<16x32xbf16>
    %c0_56 = arith.constant 0 : index
    %c0_57 = arith.constant 0 : index
    %132 = vector.load %arg10[%c0_56, %c0_57] : memref<32x64xbf16, #tpu.memory_space<vmem>>, vector<32x64xbf16>
    %cst_58 = arith.constant dense<0.000000e+00> : vector<16x64xf32>
    %133 = tpu.matmul %131, %132, %cst_58 {dimension_numbers = #tpu.dot_dimension_numbers<[1], [0], [0], [1], [0, 0, 1, 1], [], []>} : vector<16x32xbf16>, vector<32x64xbf16>, vector<16x64xf32> -> vector<16x64xf32>
    %c0_59 = arith.constant 0 : index
    %c0_60 = arith.constant 0 : index
    %134 = vector.load %arg11[%c0_59, %c0_60] : memref<32x64xbf16, #tpu.memory_space<vmem>>, vector<32x64xbf16>
    %cst_61 = arith.constant dense<0.000000e+00> : vector<16x64xf32>
    %135 = tpu.matmul %131, %134, %cst_61 {dimension_numbers = #tpu.dot_dimension_numbers<[1], [0], [0], [1], [0, 0, 1, 1], [], []>} : vector<16x32xbf16>, vector<32x64xbf16>, vector<16x64xf32> -> vector<16x64xf32>
    %136 = arith.negf %133 : vector<16x64xf32>
    %137 = math.exp %136 : vector<16x64xf32>
    %cst_62 = arith.constant 1.000000e+00 : f32
    %138 = vector.broadcast %cst_62 : f32 to vector<16x64xf32>
    %139 = arith.addf %138, %137 : vector<16x64xf32>
    %140 = arith.divf %138, %139 : vector<16x64xf32>
    %141 = arith.mulf %133, %140 : vector<16x64xf32>
    %142 = arith.mulf %141, %135 : vector<16x64xf32>
    %143 = arith.truncf %142 : vector<16x64xf32> to vector<16x64xbf16>
    %c0_63 = arith.constant 0 : index
    %c0_64 = arith.constant 0 : index
    %144 = vector.load %arg12[%c0_63, %c0_64] : memref<64x32xbf16, #tpu.memory_space<vmem>>, vector<64x32xbf16>
    %cst_65 = arith.constant dense<0.000000e+00> : vector<16x32xf32>
    %145 = tpu.matmul %143, %144, %cst_65 {dimension_numbers = #tpu.dot_dimension_numbers<[1], [0], [0], [1], [0, 0, 1, 1], [], []>} : vector<16x64xbf16>, vector<64x32xbf16>, vector<16x32xf32> -> vector<16x32xf32>
    %146 = arith.addf %117, %145 : vector<16x32xf32>
    %c0_66 = arith.constant 0 : index
    %c0_67 = arith.constant 0 : index
    %147 = vector.load %arg18[%c0_66, %c0_67] : memref<16x32xf32, #tpu.memory_space<vmem>>, vector<16x32xf32>
    tpu.vector_store %arg18[%c0_66, %c0_67], %146 {strides = array<i32>} : memref<16x32xf32, #tpu.memory_space<vmem>>, vector<16x32xf32>,
    return
  }
  func.func @transform_0(%arg0: i32) -> (i32, i32) {
    %c0_i32 = arith.constant 0 : i32
    %c0_i32_0 = arith.constant 0 : i32
    %c0_i32_1 = arith.constant 0 : i32
    return %c0_i32, %c0_i32_0 : i32, i32
  }
  func.func @transform_1(%arg0: i32) -> (i32, i32) {
    %c0_i32 = arith.constant 0 : i32
    %c0_i32_0 = arith.constant 0 : i32
    %c0_i32_1 = arith.constant 0 : i32
    return %c0_i32, %c0_i32_0 : i32, i32
  }
  func.func @transform_2(%arg0: i32) -> (i32, i32) {
    %c0_i32 = arith.constant 0 : i32
    %c0_i32_0 = arith.constant 0 : i32
    %c0_i32_1 = arith.constant 0 : i32
    return %c0_i32, %c0_i32_0 : i32, i32
  }
  func.func @transform_3(%arg0: i32) -> (i32, i32) {
    %c0_i32 = arith.constant 0 : i32
    %c0_i32_0 = arith.constant 0 : i32
    %c0_i32_1 = arith.constant 0 : i32
    return %c0_i32, %c0_i32_0 : i32, i32
  }
  func.func @transform_4(%arg0: i32) -> (i32, i32) {
    %c0_i32 = arith.constant 0 : i32
    %c0_i32_0 = arith.constant 0 : i32
    %c0_i32_1 = arith.constant 0 : i32
    return %c0_i32, %c0_i32_0 : i32, i32
  }
  func.func @transform_5(%arg0: i32) -> (i32, i32) {
    %c0_i32 = arith.constant 0 : i32
    %c0_i32_0 = arith.constant 0 : i32
    %c0_i32_1 = arith.constant 0 : i32
    return %c0_i32, %c0_i32_0 : i32, i32
  }
  func.func @transform_6(%arg0: i32) -> (i32, i32) {
    %c0_i32 = arith.constant 0 : i32
    %c0_i32_0 = arith.constant 0 : i32
    %c0_i32_1 = arith.constant 0 : i32
    return %c0_i32, %c0_i32_0 : i32, i32
  }
  func.func @transform_7(%arg0: i32) -> (i32, i32) {
    %c0_i32 = arith.constant 0 : i32
    %c0_i32_0 = arith.constant 0 : i32
    %c0_i32_1 = arith.constant 0 : i32
    return %c0_i32, %c0_i32_0 : i32, i32
  }
  func.func @transform_8(%arg0: i32) -> (i32, i32) {
    %c0_i32 = arith.constant 0 : i32
    %c0_i32_0 = arith.constant 0 : i32
    %c0_i32_1 = arith.constant 0 : i32
    return %c0_i32, %c0_i32_0 : i32, i32
  }
  func.func @transform_9(%arg0: i32) -> (i32, i32) {
    %c0_i32 = arith.constant 0 : i32
    %c0_i32_0 = arith.constant 0 : i32
    %c0_i32_1 = arith.constant 0 : i32
    return %c0_i32, %c0_i32_0 : i32, i32
  }
  func.func @transform_10(%arg0: i32) -> (i32, i32) {
    %c0_i32 = arith.constant 0 : i32
    %c0_i32_0 = arith.constant 0 : i32
    %c0_i32_1 = arith.constant 0 : i32
    return %c0_i32, %c0_i32_0 : i32, i32
  }
  func.func @transform_11(%arg0: i32) -> (i32, i32) {
    %c0_i32 = arith.constant 0 : i32
    %c0_i32_0 = arith.constant 0 : i32
    %c0_i32_1 = arith.constant 0 : i32
    return %c0_i32, %c0_i32_0 : i32, i32
  }
  func.func @transform_12(%arg0: i32) -> (i32, i32) {
    %c0_i32 = arith.constant 0 : i32
    %c0_i32_0 = arith.constant 0 : i32
    %c0_i32_1 = arith.constant 0 : i32
    return %c0_i32, %c0_i32_0 : i32, i32
  }
  func.func @transform_13(%arg0: i32) -> (i32, i32) {
    %c0_i32 = arith.constant 0 : i32
    %c0_i32_0 = arith.constant 0 : i32
    %c0_i32_1 = arith.constant 0 : i32
    return %c0_i32, %c0_i32_0 : i32, i32
  }
  func.func @transform_14(%arg0: i32) -> (i32, i32) {
    %c0_i32 = arith.constant 0 : i32
    %c0_i32_0 = arith.constant 0 : i32
    %c0_i32_1 = arith.constant 0 : i32
    return %c0_i32, %c0_i32_0 : i32, i32
  }
  func.func @transform_15(%arg0: i32) -> (i32, i32, i32) {
    %c0_i32 = arith.constant 0 : i32
    %c0_i32_0 = arith.constant 0 : i32
    %c0_i32_1 = arith.constant 0 : i32
    %c0_i32_2 = arith.constant 0 : i32
    return %c0_i32, %c0_i32_0, %c0_i32_1 : i32, i32, i32
  }
  func.func @transform_16(%arg0: i32) -> (i32, i32) {
    %c0_i32 = arith.constant 0 : i32
    %c0_i32_0 = arith.constant 0 : i32
    %c0_i32_1 = arith.constant 0 : i32
    return %c0_i32, %c0_i32_0 : i32, i32
  }
  func.func @transform_17(%arg0: i32) -> (i32, i32) {
    %c0_i32 = arith.constant 0 : i32
    %c0_i32_0 = arith.constant 0 : i32
    %c0_i32_1 = arith.constant 0 : i32
    return %c0_i32, %c0_i32_0 : i32, i32
  }
}

</mosaic_0001>

<llo_original>
// kernel: memorizing_decoder_forward.1
$region0: #{memorizing_decoder_forward.1}
  #allocation0 [shape = 'u32[]', space=smem, size = 0x4, offset = 0x4, fixed_abs, tag = 'smem constant byte address 0x4 - core index']
  #allocation1 [shape = 'u32[144,128]{1,0:T(1,128)}', space=vmem, size = 0x12000, scoped, tag = 'internal scratch']
  %s0 = inlined_call_operand.vmem [shape: f32[16,32], index: 0, kind: input, shape index: {}]
  %s1 = inlined_call_operand.vmem [shape: f32[128,32], index: 1, kind: input, shape index: {}]
  %s2 = inlined_call_operand.vmem [shape: f32[1,32], index: 2, kind: input, shape index: {}]
  %s3 = inlined_call_operand.hbm [shape: f32[1,32], index: 3, kind: input, shape index: {}]
  %s4 = inlined_call_operand.hbm [shape: f32[1,32], index: 4, kind: input, shape index: {}]
  %s5 = inlined_call_operand.vmem [shape: bf16[32,32], index: 5, kind: input, shape index: {}]
  %s6 = inlined_call_operand.vmem [shape: bf16[32,32], index: 6, kind: input, shape index: {}]
  %s7 = inlined_call_operand.vmem [shape: bf16[32,32], index: 7, kind: input, shape index: {}]
  %s8 = inlined_call_operand.vmem [shape: bf16[32,32], index: 8, kind: input, shape index: {}]
  %s9 = inlined_call_operand.vmem [shape: bf16[32,64], index: 9, kind: input, shape index: {}]
  %s10 = inlined_call_operand.vmem [shape: bf16[32,64], index: 10, kind: input, shape index: {}]
  %s11 = inlined_call_operand.vmem [shape: bf16[64,32], index: 11, kind: input, shape index: {}]
  %s12 = inlined_call_operand.vmem [shape: f32[32,32], index: 12, kind: input, shape index: {}]
  %s13 = inlined_call_operand.vmem [shape: f32[16,32], index: 13, kind: input, shape index: {}]
  %s14 = inlined_call_operand.vmem [shape: f32[16,32], index: 14, kind: input, shape index: {}]
  %s15 = inlined_call_operand.vmem [shape: f32[4,1,32], index: 15, kind: input, shape index: {}]
  %s16 = inlined_call_operand.vmem [shape: f32[16,16], index: 16, kind: input, shape index: {}]
  %s17 = inlined_call_operand.hbm [shape: f32[16,32], index: 17, kind: output, shape index: {}]
  %s18 = sld [smem:[#allocation0]]
  $region86: #{memorizing_decoder_forward.1} parent=0
    _
  %s20 = ssub.s32 1, %s18
  %s21 = scalar_select 0, %s20, %s18
  $region1: #{memorizing_decoder_forward.1} parent=0
    #allocation2 [shape = 'u8[512]{0}', space=vmem, size = 0x400, scoped, tag = 'input window, operand 3, single buffered']
    #allocation3 [shape = 's32[1]{0}', space=sflag, size = 0x4, scoped, tag = 'scoped memory for memorizing_decoder_forward.1']
    #allocation4 [shape = 's32[1]{0}', space=sflag, size = 0x4, scoped, tag = 'scoped memory for memorizing_decoder_forward.1']
    #allocation5 [shape = 'u8[512]{0}', space=vmem, size = 0x400, scoped, tag = 'input window, operand 4, single buffered']
    #allocation6 [shape = 's32[1]{0}', space=sflag, size = 0x4, scoped, tag = 'scoped memory for memorizing_decoder_forward.1']
    #allocation7 [shape = 'u8[8192]{0}', space=vmem, size = 0x2000, scoped, tag = 'output window, operand 0, single buffered']
    %22 = vsyncpa [#allocation3], 0
    %23 = vsyncpa [#allocation6], 0
    %24 = vsyncpa [#allocation4], 0
    // Predicated region
    $region2: #{memorizing_decoder_forward.1} parent=1 // pred_check
      _
    $region3: #{memorizing_decoder_forward.1} parent=1 // pred_check_branch
      %26 = sbr.rel (0) target = $region5
    $region4: #{memorizing_decoder_forward.1} parent=1 // pred_region
      _
    $region5: #{memorizing_decoder_forward.1} parent=1 // pred_fallthru
      _
    // Predicated region
    $region6: #{memorizing_decoder_forward.1} parent=1 // pred_check
      _
    $region7: #{memorizing_decoder_forward.1} parent=1 // pred_check_branch
      %28 = sbr.rel (0) target = $region9
    $region8: #{memorizing_decoder_forward.1} parent=1 // pred_region
      _
    $region9: #{memorizing_decoder_forward.1} parent=1 // pred_fallthru
      _
    // Predicated region
    $region10: #{memorizing_decoder_forward.1} parent=1 // pred_check
      _
    $region11: #{memorizing_decoder_forward.1} parent=1 // pred_check_branch
      %30 = sbr.rel (0) target = $region13
    $region12: #{memorizing_decoder_forward.1} parent=1 // pred_region
      _
    $region13: #{memorizing_decoder_forward.1} parent=1 // pred_fallthru
      _
    // Predicated region
    $region14: #{memorizing_decoder_forward.1} parent=1 // pred_check
      _
    $region15: #{memorizing_decoder_forward.1} parent=1 // pred_check_branch
      %32 = sbr.rel (0) target = $region17
    $region16: #{memorizing_decoder_forward.1} parent=1 // pred_region
      %s34 = ssub.s32 16, 16
      %35 = vsyncadd [#allocation3], %s34
      %s37 = sshll.u32 [#allocation2], 4
      %s38 = int_to_ptr.vmem [resolvable:$true] %s37
      %40 = dma.hbm_to_vmem [thread:$0]  %s3, 16, %s38, [#allocation3]
    $region17: #{memorizing_decoder_forward.1} parent=1 // pred_fallthru
      _
    // Predicated region
    $region18: #{memorizing_decoder_forward.1} parent=1 // pred_check
      _
    $region19: #{memorizing_decoder_forward.1} parent=1 // pred_check_branch
      %42 = sbr.rel (0) target = $region21
    $region20: #{memorizing_decoder_forward.1} parent=1 // pred_region
      %s44 = ssub.s32 16, 16
      %45 = vsyncadd [#allocation6], %s44
      %s47 = sshll.u32 [#allocation5], 4
      %s48 = int_to_ptr.vmem [resolvable:$true] %s47
      %50 = dma.hbm_to_vmem [thread:$0]  %s4, 16, %s48, [#allocation6]
    $region21: #{memorizing_decoder_forward.1} parent=1 // pred_fallthru
      _
    // Predicated region
    $region22: #{memorizing_decoder_forward.1} parent=1 // pred_check
      _
    $region23: #{memorizing_decoder_forward.1} parent=1 // pred_check_branch
      %52 = sbr.rel (0) target = $region25
    $region24: #{memorizing_decoder_forward.1} parent=1 // pred_region
      _
    $region25: #{memorizing_decoder_forward.1} parent=1 // pred_fallthru
      _
    // Predicated region
    $region26: #{memorizing_decoder_forward.1} parent=1 // pred_check
      _
    $region27: #{memorizing_decoder_forward.1} parent=1 // pred_check_branch
      %54 = sbr.rel (0) target = $region29
    $region28: #{memorizing_decoder_forward.1} parent=1 // pred_region
      _
    $region29: #{memorizing_decoder_forward.1} parent=1 // pred_fallthru
      _
    // Predicated region
    $region30: #{memorizing_decoder_forward.1} parent=1 // pred_check
      _
    $region31: #{memorizing_decoder_forward.1} parent=1 // pred_check_branch
      %56 = sbr.rel (0) target = $region33
    $region32: #{memorizing_decoder_forward.1} parent=1 // pred_region
      _
    $region33: #{memorizing_decoder_forward.1} parent=1 // pred_fallthru
      _
    // Predicated region
    $region34: #{memorizing_decoder_forward.1} parent=1 // pred_check
      _
    $region35: #{memorizing_decoder_forward.1} parent=1 // pred_check_branch
      %58 = sbr.rel (0) target = $region37
    $region36: #{memorizing_decoder_forward.1} parent=1 // pred_region
      _
    $region37: #{memorizing_decoder_forward.1} parent=1 // pred_fallthru
      _
    // Predicated region
    $region38: #{memorizing_decoder_forward.1} parent=1 // pred_check
      _
    $region39: #{memorizing_decoder_forward.1} parent=1 // pred_check_branch
      %60 = sbr.rel (0) target = $region41
    $region40: #{memorizing_decoder_forward.1} parent=1 // pred_region
      _
    $region41: #{memorizing_decoder_forward.1} parent=1 // pred_fallthru
      _
    // Predicated region
    $region42: #{memorizing_decoder_forward.1} parent=1 // pred_check
      _
    $region43: #{memorizing_decoder_forward.1} parent=1 // pred_check_branch
      %62 = sbr.rel (0) target = $region45
    $region44: #{memorizing_decoder_forward.1} parent=1 // pred_region
      _
    $region45: #{memorizing_decoder_forward.1} parent=1 // pred_fallthru
      _
    // Predicated region
    $region46: #{memorizing_decoder_forward.1} parent=1 // pred_check
      _
    $region47: #{memorizing_decoder_forward.1} parent=1 // pred_check_branch
      %64 = sbr.rel (0) target = $region49
    $region48: #{memorizing_decoder_forward.1} parent=1 // pred_region
      _
    $region49: #{memorizing_decoder_forward.1} parent=1 // pred_fallthru
      _
    // Predicated region
    $region50: #{memorizing_decoder_forward.1} parent=1 // pred_check
      _
    $region51: #{memorizing_decoder_forward.1} parent=1 // pred_check_branch
      %66 = sbr.rel (0) target = $region53
    $region52: #{memorizing_decoder_forward.1} parent=1 // pred_region
      _
    $region53: #{memorizing_decoder_forward.1} parent=1 // pred_fallthru
      _
    // Predicated region
    $region54: #{memorizing_decoder_forward.1} parent=1 // pred_check
      _
    $region55: #{memorizing_decoder_forward.1} parent=1 // pred_check_branch
      %68 = sbr.rel (0) target = $region57
    $region56: #{memorizing_decoder_forward.1} parent=1 // pred_region
      _
    $region57: #{memorizing_decoder_forward.1} parent=1 // pred_fallthru
      _
    // Predicated region
    $region58: #{memorizing_decoder_forward.1} parent=1 // pred_check
      _
    $region59: #{memorizing_decoder_forward.1} parent=1 // pred_check_branch
      %70 = sbr.rel (0) target = $region61
    $region60: #{memorizing_decoder_forward.1} parent=1 // pred_region
      _
    $region61: #{memorizing_decoder_forward.1} parent=1 // pred_fallthru
      _
    // Predicated region
    $region62: #{memorizing_decoder_forward.1} parent=1 // pred_check
      _
    $region63: #{memorizing_decoder_forward.1} parent=1 // pred_check_branch
      %72 = sbr.rel (0) target = $region65
    $region64: #{memorizing_decoder_forward.1} parent=1 // pred_region
      _
    $region65: #{memorizing_decoder_forward.1} parent=1 // pred_fallthru
      _
    // Predicated region
    $region66: #{memorizing_decoder_forward.1} parent=1 // pred_check
      _
    $region67: #{memorizing_decoder_forward.1} parent=1 // pred_check_branch
      %74 = sbr.rel (0) target = $region69
    $region68: #{memorizing_decoder_forward.1} parent=1 // pred_region
      _
    $region69: #{memorizing_decoder_forward.1} parent=1 // pred_fallthru
      _
    // Predicated region
    $region70: #{memorizing_decoder_forward.1} parent=1 // pred_check
      _
    $region71: #{memorizing_decoder_forward.1} parent=1 // pred_check_branch
      %76 = sbr.rel (0) target = $region73
    $region72: #{memorizing_decoder_forward.1} parent=1 // pred_region
      %77 = dma.done [#allocation3], 16
    $region73: #{memorizing_decoder_forward.1} parent=1 // pred_fallthru
      _
    // Predicated region
    $region74: #{memorizing_decoder_forward.1} parent=1 // pred_check
      _
    $region75: #{memorizing_decoder_forward.1} parent=1 // pred_check_branch
      %79 = sbr.rel (0) target = $region77
    $region76: #{memorizing_decoder_forward.1} parent=1 // pred_region
      %80 = dma.done [#allocation6], 16
    $region77: #{memorizing_decoder_forward.1} parent=1 // pred_fallthru
      _
    %v82 = vld [vmem:[%s0] sm:$0xff]
    %v83 = vld [vmem:[%s0 + $0x8] sm:$0xff]
    %v84 = vld [vmem:[%s1] sm:$0xff]
    %v85 = vld [vmem:[%s1 + $0x8] sm:$0xff]
    %v86 = vld [vmem:[%s1 + $0x10] sm:$0xff]
    %v87 = vld [vmem:[%s1 + $0x18] sm:$0xff]
    %v88 = vld [vmem:[%s1 + $0x20] sm:$0xff]
    %v89 = vld [vmem:[%s1 + $0x28] sm:$0xff]
    %v90 = vld [vmem:[%s1 + $0x30] sm:$0xff]
    %v91 = vld [vmem:[%s1 + $0x38] sm:$0xff]
    %v92 = vld [vmem:[%s1 + $0x40] sm:$0xff]
    %v93 = vld [vmem:[%s1 + $0x48] sm:$0xff]
    %v94 = vld [vmem:[%s1 + $0x50] sm:$0xff]
    %v95 = vld [vmem:[%s1 + $0x58] sm:$0xff]
    %v96 = vld [vmem:[%s1 + $0x60] sm:$0xff]
    %v97 = vld [vmem:[%s1 + $0x68] sm:$0xff]
    %v98 = vld [vmem:[%s1 + $0x70] sm:$0xff]
    %v99 = vld [vmem:[%s1 + $0x78] sm:$0xff]
    %vm100 = vcmask 261120
    %v102 = vsel %vm100, %v82, 0
    %v105 = vsel %vm100, %v83, 0
    %v108 = vsel %vm100, %v84, 0
    %v111 = vsel %vm100, %v85, 0
    %v114 = vsel %vm100, %v86, 0
    %v117 = vsel %vm100, %v87, 0
    %v120 = vsel %vm100, %v88, 0
    %v123 = vsel %vm100, %v89, 0
    %v126 = vsel %vm100, %v90, 0
    %v129 = vsel %vm100, %v91, 0
    %v132 = vsel %vm100, %v92, 0
    %v135 = vsel %vm100, %v93, 0
    %v138 = vsel %vm100, %v94, 0
    %v141 = vsel %vm100, %v95, 0
    %v144 = vsel %vm100, %v96, 0
    %v147 = vsel %vm100, %v97, 0
    %v150 = vsel %vm100, %v98, 0
    %v153 = vsel %vm100, %v99, 0
    %155 = vmatprep.subr.mxu0 0.0
    %156 = vmatpush1.xpose.msra.mxu0 %v108
    %157 = vmatprep.subr.mxu0 0.0
    %158 = vmatpush1.xpose.msra.mxu0 %v111
    %159 = vmatprep.subr.mxu0 0.0
    %160 = vmatpush1.xpose.msra.mxu0 %v114
    %161 = vmatprep.subr.mxu0 0.0
    %162 = vmatpush1.xpose.msra.mxu0 %v117
    %163 = vmatprep.subr.mxu0 0.0
    %164 = vmatpush1.xpose.msra.mxu0 %v120
    %165 = vmatprep.subr.mxu0 0.0
    %166 = vmatpush1.xpose.msra.mxu0 %v123
    %167 = vmatprep.subr.mxu0 0.0
    %168 = vmatpush1.xpose.msra.mxu0 %v126
    %169 = vmatprep.subr.mxu0 0.0
    %170 = vmatpush1.xpose.msra.mxu0 %v129
    %171 = vmatprep.subr.mxu0 0.0
    %172 = vmatpush1.xpose.msra.mxu0 %v132
    %173 = vmatprep.subr.mxu0 0.0
    %174 = vmatpush1.xpose.msra.mxu0 %v135
    %175 = vmatprep.subr.mxu0 0.0
    %176 = vmatpush1.xpose.msra.mxu0 %v138
    %177 = vmatprep.subr.mxu0 0.0
    %178 = vmatpush1.xpose.msra.mxu0 %v141
    %179 = vmatprep.subr.mxu0 0.0
    %180 = vmatpush1.xpose.msra.mxu0 %v144
    %181 = vmatprep.subr.mxu0 0.0
    %182 = vmatpush1.xpose.msra.mxu0 %v147
    %183 = vmatprep.subr.mxu0 0.0
    %184 = vmatpush1.xpose.msra.mxu0 %v150
    %185 = vmatprep.subr.mxu0 0.0
    %186 = vmatpush1.xpose.msra.mxu0 %v153
    %187 = vmatprep.subr.mxu0 0.0
    %188 = vmatpush1.xpose.msra.mxu0 0.0
    %189 = vmatprep.subr.mxu0 0.0
    %190 = vmatpush1.xpose.msra.mxu0 0.0
    %191 = vmatprep.subr.mxu0 0.0
    %192 = vmatpush1.xpose.msra.mxu0 0.0
    %193 = vmatprep.subr.mxu0 0.0
    %194 = vmatpush1.xpose.msra.mxu0 0.0
    %195 = vmatprep.subr.mxu0 0.0
    %196 = vmatpush1.xpose.msra.mxu0 0.0
    %197 = vmatprep.subr.mxu0 0.0
    %198 = vmatpush1.xpose.msra.mxu0 0.0
    %199 = vmatprep.subr.mxu0 0.0
    %200 = vmatpush1.xpose.msra.mxu0 0.0
    %201 = vmatprep.subr.mxu0 0.0
    %202 = vmatpush1.xpose.msra.mxu0 0.0
    %203 = vmatprep.subr.mxu0 0.0
    %204 = vmatpush1.xpose.msra.mxu0 0.0
    %205 = vmatprep.subr.mxu0 0.0
    %206 = vmatpush1.xpose.msra.mxu0 0.0
    %207 = vmatprep.subr.mxu0 0.0
    %208 = vmatpush1.xpose.msra.mxu0 0.0
    %209 = vmatprep.subr.mxu0 0.0
    %210 = vmatpush1.xpose.msra.mxu0 0.0
    %211 = vmatprep.subr.mxu0 0.0
    %212 = vmatpush1.xpose.msra.mxu0 0.0
    %213 = vmatprep.subr.mxu0 0.0
    %214 = vmatpush1.xpose.msra.mxu0 0.0
    %215 = vmatprep.subr.mxu0 0.0
    %216 = vmatpush1.xpose.msra.mxu0 0.0
    %217 = vmatprep.subr.mxu0 0.0
    %218 = vmatpush1.xpose.msra.mxu0 0.0
    %219 = vmatprep.mubr.f32.mxu0 0.0
    %220 = vmatmul.mubr.f32.gmra.mrb[0].mxu0 %v102
    %v221 = vpop.f32.mrb[0].mxu0
    %v222 = vadd.f32 0.0, %v221
    %v223 = vpop.f32.mrb[0].mxu0
    %224 = vmatprep.mubr.f32.mxu0 0.0
    %225 = vmatmul.mubr.f32.gmra.mrb[0].mxu0 %v105
    %v226 = vpop.f32.mrb[0].mxu0
    %v227 = vadd.f32 0.0, %v226
    %v228 = vpop.f32.mrb[0].mxu0
    %229 = vdwg.mxu0
    %230 = vmax.xlane.f32.xlu0 %v222
    %v231 = vpop.xlane.xlu0 %230
    %232 = vmax.xlane.f32.xlu0 %v227
    %v233 = vpop.xlane.xlu0 %232
    %v234 = vlaneseq
    %v235 = vand.u32 %v234, 127
    %v236 = vcvt.s32.f32 %v235
    %vm237 = vcmp.ge.f32.partialorder %v222, %v231
    %vm238 = vcmp.ge.f32.partialorder %v227, %v233
    %v239 = vsel %vm237, %v236, 128.0
    %v240 = vsel %vm238, %v236, 128.0
    %241 = vmin.xlane.f32.xlu0 %v239
    %v242 = vpop.xlane.xlu0 %241
    %243 = vmin.xlane.f32.xlu0 %v240
    %v244 = vpop.xlane.xlu0 %243
    %vm245 = vcmp.eq.f32.partialorder %v236, %v242
    %vm246 = vcmp.eq.f32.partialorder %v236, %v244
    %v247 = vsel %vm245, 1, 0
    %v248 = vsel %vm246, 1, 0
    %v249 = vcvt.s32.f32 %v247
    %v250 = vcvt.s32.f32 %v248
    %251 = vmatprep.subr.mxu0 0.0
    %252 = vmatpush1.msra.mxu0 %v84
    %253 = vmatprep.subr.mxu0 0.0
    %254 = vmatpush1.msra.mxu0 %v85
    %255 = vmatprep.subr.mxu0 0.0
    %256 = vmatpush1.msra.mxu0 %v86
    %257 = vmatprep.subr.mxu0 0.0
    %258 = vmatpush1.msra.mxu0 %v87
    %259 = vmatprep.subr.mxu0 0.0
    %260 = vmatpush1.msra.mxu0 %v88
    %261 = vmatprep.subr.mxu0 0.0
    %262 = vmatpush1.msra.mxu0 %v89
    %263 = vmatprep.subr.mxu0 0.0
    %264 = vmatpush1.msra.mxu0 %v90
    %265 = vmatprep.subr.mxu0 0.0
    %266 = vmatpush1.msra.mxu0 %v91
    %267 = vmatprep.subr.mxu0 0.0
    %268 = vmatpush1.msra.mxu0 %v92
    %269 = vmatprep.subr.mxu0 0.0
    %270 = vmatpush1.msra.mxu0 %v93
    %271 = vmatprep.subr.mxu0 0.0
    %272 = vmatpush1.msra.mxu0 %v94
    %273 = vmatprep.subr.mxu0 0.0
    %274 = vmatpush1.msra.mxu0 %v95
    %275 = vmatprep.subr.mxu0 0.0
    %276 = vmatpush1.msra.mxu0 %v96
    %277 = vmatprep.subr.mxu0 0.0
    %278 = vmatpush1.msra.mxu0 %v97
    %279 = vmatprep.subr.mxu0 0.0
    %280 = vmatpush1.msra.mxu0 %v98
    %281 = vmatprep.subr.mxu0 0.0
    %282 = vmatpush1.msra.mxu0 %v99
    %283 = vmatprep.subr.mxu0 0.0
    %284 = vmatpush1.msra.mxu0 0.0
    %285 = vmatprep.subr.mxu0 0.0
    %286 = vmatpush1.msra.mxu0 0.0
    %287 = vmatprep.subr.mxu0 0.0
    %288 = vmatpush1.msra.mxu0 0.0
    %289 = vmatprep.subr.mxu0 0.0
    %290 = vmatpush1.msra.mxu0 0.0
    %291 = vmatprep.subr.mxu0 0.0
    %292 = vmatpush1.msra.mxu0 0.0
    %293 = vmatprep.subr.mxu0 0.0
    %294 = vmatpush1.msra.mxu0 0.0
    %295 = vmatprep.subr.mxu0 0.0
    %296 = vmatpush1.msra.mxu0 0.0
    %297 = vmatprep.subr.mxu0 0.0
    %298 = vmatpush1.msra.mxu0 0.0
    %299 = vmatprep.subr.mxu0 0.0
    %300 = vmatpush1.msra.mxu0 0.0
    %301 = vmatprep.subr.mxu0 0.0
    %302 = vmatpush1.msra.mxu0 0.0
    %303 = vmatprep.subr.mxu0 0.0
    %304 = vmatpush1.msra.mxu0 0.0
    %305 = vmatprep.subr.mxu0 0.0
    %306 = vmatpush1.msra.mxu0 0.0
    %307 = vmatprep.subr.mxu0 0.0
    %308 = vmatpush1.msra.mxu0 0.0
    %309 = vmatprep.subr.mxu0 0.0
    %310 = vmatpush1.msra.mxu0 0.0
    %311 = vmatprep.subr.mxu0 0.0
    %312 = vmatpush1.msra.mxu0 0.0
    %313 = vmatprep.subr.mxu0 0.0
    %314 = vmatpush1.msra.mxu0 0.0
    %315 = vmatprep.mubr.f32.mxu0 0.0
    %316 = vmatmul.mubr.f32.gmra.mrb[0].mxu0 %v249
    %v317 = vpop.f32.mrb[0].mxu0
    %v318 = vadd.f32 0.0, %v317
    %v319 = vpop.f32.mrb[0].mxu0
    %320 = vmatprep.mubr.f32.mxu0 0.0
    %321 = vmatmul.mubr.f32.gmra.mrb[0].mxu0 %v250
    %v322 = vpop.f32.mrb[0].mxu0
    %v323 = vadd.f32 0.0, %v322
    %v324 = vpop.f32.mrb[0].mxu0
    %325 = vdwg.mxu0
    %v326 = vmul.f32 %v82, %v82
    %v327 = vmul.f32 %v83, %v83
    %v328 = vsel %vm100, %v326, 0.0
    %329 = vadd.xlane.f32.xlu0 %v328
    %v330 = vpop.xlane.xlu0 %329
    %v331 = vsel %vm100, %v327, 0.0
    %332 = vadd.xlane.f32.xlu0 %v331
    %v333 = vpop.xlane.xlu0 %332
    %v334 = vrsqrt.pop %v330
    %v335 = vmul.f32 %v330, %v334
    %vm336 = vcmp.eq.f32.partialorder %v330, inf
    %v337 = vsel %vm336, %v330, %v335
    %vm338 = vcmp.eq.f32.partialorder %v330, 0.0
    %v339 = vand.u32 %v330, 2147483648
    %v340 = vsel %vm338, %v339, %v337
    %v341 = vrsqrt.pop %v333
    %v342 = vmul.f32 %v333, %v341
    %vm343 = vcmp.eq.f32.partialorder %v333, inf
    %v344 = vsel %vm343, %v333, %v342
    %vm345 = vcmp.eq.f32.partialorder %v333, 0.0
    %v346 = vand.u32 %v333, 2147483648
    %v347 = vsel %vm345, %v346, %v344
    %v348 = vadd.f32 %v340, 0.0001
    %v349 = vadd.f32 %v347, 0.0001
    %v350 = vrcp.pop %v348
    %v351 = vrcp.pop %v349
    %v352 = vmul.f32 %v82, %v350
    %v353 = vmul.f32 %v83, %v351
    %v354 = vmul.f32 %v318, %v318
    %v355 = vmul.f32 %v323, %v323
    %v356 = vsel %vm100, %v354, 0.0
    %357 = vadd.xlane.f32.xlu0 %v356
    %v358 = vpop.xlane.xlu0 %357
    %v359 = vsel %vm100, %v355, 0.0
    %360 = vadd.xlane.f32.xlu0 %v359
    %v361 = vpop.xlane.xlu0 %360
    %v362 = vrsqrt.pop %v358
    %v363 = vmul.f32 %v358, %v362
    %vm364 = vcmp.eq.f32.partialorder %v358, inf
    %v365 = vsel %vm364, %v358, %v363
    %vm366 = vcmp.eq.f32.partialorder %v358, 0.0
    %v367 = vand.u32 %v358, 2147483648
    %v368 = vsel %vm366, %v367, %v365
    %v369 = vrsqrt.pop %v361
    %v370 = vmul.f32 %v361, %v369
    %vm371 = vcmp.eq.f32.partialorder %v361, inf
    %v372 = vsel %vm371, %v361, %v370
    %vm373 = vcmp.eq.f32.partialorder %v361, 0.0
    %v374 = vand.u32 %v361, 2147483648
    %v375 = vsel %vm373, %v374, %v372
    %v376 = vadd.f32 %v368, 0.0001
    %v377 = vadd.f32 %v375, 0.0001
    %v378 = vrcp.pop %v376
    %v379 = vrcp.pop %v377
    %v380 = vmul.f32 %v318, %v378
    %v381 = vmul.f32 %v323, %v379
    %v382 = vld [vmem:[%s2] sm:$0x1]
    %v383 = vxor.u32 %v382, 2147483648
    %v384 = vmul.f32 %v383, 1.442695
    %v385 = vpow.pop %v384
    %v386 = vadd.f32 %v385, 1.0
    %v387 = vrcp.pop %v386
    %v388 = vmul.f32 1.0, %v387
    %v390 = vlaneseq
    %v391 = vshrl.u32 %v390, 7
    %v392 = vsub.s32 0, %v391
    %v393 = vrot.slane %v388, %v392
    %v395 = vmul.f32 %v393, %v352
    %v396 = vmul.f32 %v393, %v353
    %v397 = vsub.f32 1.0, %v388
    %v399 = vlaneseq
    %v400 = vshrl.u32 %v399, 7
    %v401 = vsub.s32 0, %v400
    %v402 = vrot.slane %v397, %v401
    %v404 = vmul.f32 %v402, %v380
    %v405 = vmul.f32 %v402, %v381
    %v406 = vadd.f32 %v395, %v404
    %v407 = vadd.f32 %v396, %v405
    %v408 = vmul.f32 %v406, %v348
    %v409 = vmul.f32 %v407, %v349
    %v410 = vmul.f32 %v408, %v408
    %v411 = vmul.f32 %v409, %v409
    %v412 = vsel %vm100, %v410, 0.0
    %413 = vadd.xlane.f32.xlu0 %v412
    %v414 = vpop.xlane.xlu0 %413
    %v415 = vsel %vm100, %v411, 0.0
    %416 = vadd.xlane.f32.xlu0 %v415
    %v417 = vpop.xlane.xlu0 %416
    %v418 = vrcp.pop 32.0
    %v419 = vmul.f32 %v414, %v418
    %v420 = vmul.f32 %v417, %v418
    %v421 = vadd.f32 %v419, 1e-06
    %v422 = vadd.f32 %v420, 1e-06
    %v423 = vrsqrt.pop %v421
    %v424 = vrsqrt.pop %v422
    %v425 = vmul.f32 %v408, %v423
    %v426 = vmul.f32 %v409, %v424
    %v427 = vld [vmem:[#allocation2] sm:$0x1]
    %v429 = vlaneseq
    %v430 = vshrl.u32 %v429, 7
    %v431 = vsub.s32 0, %v430
    %v432 = vrot.slane %v427, %v431
    %v434 = vmul.f32 %v425, %v432
    %v435 = vmul.f32 %v426, %v432
    %v436 = vpack.c.bf16 %v435, %v434
    %v437 = vld [vmem:[%s5] sm:$0xf]
    %v438 = vld [vmem:[%s5 + $0x4] sm:$0xf]
    %v439 = vld [vmem:[%s5 + $0x8] sm:$0xf]
    %v440 = vld [vmem:[%s5 + $0xc] sm:$0xf]
    %v445 = vunpack.c.l.b16 %v437
    %v446 = vunpack.c.l.b16 %v438
    %v447 = vunpack.c.l.b16 %v439
    %v448 = vunpack.c.l.b16 %v440
    %v449 = vpack.c.b16 %v446, %v445
    %v450 = vpack.c.b16 %v448, %v447
    %v454 = vsel %vm100, %v436, 0
    %456 = vmatprep.subr.bf16.mxu0 0
    %457 = vmatpush1.bf16.msra.mxu0 %v449
    %458 = vmatprep.subr.bf16.mxu0 0
    %459 = vmatpush1.bf16.msra.mxu0 %v450
    %460 = vmatprep.subr.bf16.mxu0 0
    %461 = vmatpush1.bf16.msra.mxu0 0
    %462 = vmatprep.subr.bf16.mxu0 0
    %463 = vmatpush1.bf16.msra.mxu0 0
    %464 = vmatprep.subr.bf16.mxu0 0
    %465 = vmatpush1.bf16.msra.mxu0 0
    %466 = vmatprep.subr.bf16.mxu0 0
    %467 = vmatpush1.bf16.msra.mxu0 0
    %468 = vmatprep.subr.bf16.mxu0 0
    %469 = vmatpush1.bf16.msra.mxu0 0
    %470 = vmatprep.subr.bf16.mxu0 0
    %471 = vmatpush1.bf16.msra.mxu0 0
    %472 = vmatprep.subr.bf16.mxu0 0
    %473 = vmatpush1.bf16.msra.mxu0 0
    %474 = vmatprep.subr.bf16.mxu0 0
    %475 = vmatpush1.bf16.msra.mxu0 0
    %476 = vmatprep.subr.bf16.mxu0 0
    %477 = vmatpush1.bf16.msra.mxu0 0
    %478 = vmatprep.subr.bf16.mxu0 0
    %479 = vmatpush1.bf16.msra.mxu0 0
    %480 = vmatprep.subr.bf16.mxu0 0
    %481 = vmatpush1.bf16.msra.mxu0 0
    %482 = vmatprep.subr.bf16.mxu0 0
    %483 = vmatpush1.bf16.msra.mxu0 0
    %484 = vmatprep.subr.bf16.mxu0 0
    %485 = vmatpush1.bf16.msra.mxu0 0
    %486 = vmatprep.subr.bf16.mxu0 0
    %487 = vmatpush1.bf16.msra.mxu0 0
    %488 = vmatprep.mubr.bf16.mxu0 0
    %489 = vmatmul.mubr.bf16.gmra.mrb[0].mxu0 %v454
    %v490 = vpop.f32.mrb[0].mxu0
    %v491 = vadd.f32 0.0, %v490
    %v492 = vpop.f32.mrb[0].mxu0
    %v493 = vpop.f32.mrb[0].mxu0
    %v494 = vadd.f32 0.0, %v493
    %v495 = vpop.f32.mrb[0].mxu0
    %496 = vdwg.mxu0
    %v497 = vld [vmem:[%s6] sm:$0xf]
    %v498 = vld [vmem:[%s6 + $0x4] sm:$0xf]
    %v499 = vld [vmem:[%s6 + $0x8] sm:$0xf]
    %v500 = vld [vmem:[%s6 + $0xc] sm:$0xf]
    %v505 = vunpack.c.l.b16 %v497
    %v506 = vunpack.c.l.b16 %v498
    %v507 = vunpack.c.l.b16 %v499
    %v508 = vunpack.c.l.b16 %v500
    %v509 = vpack.c.b16 %v506, %v505
    %v510 = vpack.c.b16 %v508, %v507
    %513 = vmatprep.subr.bf16.mxu0 0
    %514 = vmatpush1.bf16.msra.mxu0 %v509
    %515 = vmatprep.subr.bf16.mxu0 0
    %516 = vmatpush1.bf16.msra.mxu0 %v510
    %517 = vmatprep.subr.bf16.mxu0 0
    %518 = vmatpush1.bf16.msra.mxu0 0
    %519 = vmatprep.subr.bf16.mxu0 0
    %520 = vmatpush1.bf16.msra.mxu0 0
    %521 = vmatprep.subr.bf16.mxu0 0
    %522 = vmatpush1.bf16.msra.mxu0 0
    %523 = vmatprep.subr.bf16.mxu0 0
    %524 = vmatpush1.bf16.msra.mxu0 0
    %525 = vmatprep.subr.bf16.mxu0 0
    %526 = vmatpush1.bf16.msra.mxu0 0
    %527 = vmatprep.subr.bf16.mxu0 0
    %528 = vmatpush1.bf16.msra.mxu0 0
    %529 = vmatprep.subr.bf16.mxu0 0
    %530 = vmatpush1.bf16.msra.mxu0 0
    %531 = vmatprep.subr.bf16.mxu0 0
    %532 = vmatpush1.bf16.msra.mxu0 0
    %533 = vmatprep.subr.bf16.mxu0 0
    %534 = vmatpush1.bf16.msra.mxu0 0
    %535 = vmatprep.subr.bf16.mxu0 0
    %536 = vmatpush1.bf16.msra.mxu0 0
    %537 = vmatprep.subr.bf16.mxu0 0
    %538 = vmatpush1.bf16.msra.mxu0 0
    %539 = vmatprep.subr.bf16.mxu0 0
    %540 = vmatpush1.bf16.msra.mxu0 0
    %541 = vmatprep.subr.bf16.mxu0 0
    %542 = vmatpush1.bf16.msra.mxu0 0
    %543 = vmatprep.subr.bf16.mxu0 0
    %544 = vmatpush1.bf16.msra.mxu0 0
    %545 = vmatprep.mubr.bf16.mxu0 0
    %546 = vmatmul.mubr.bf16.gmra.mrb[0].mxu0 %v454
    %v547 = vpop.f32.mrb[0].mxu0
    %v548 = vadd.f32 0.0, %v547
    %v549 = vpop.f32.mrb[0].mxu0
    %v550 = vpop.f32.mrb[0].mxu0
    %v551 = vadd.f32 0.0, %v550
    %v552 = vpop.f32.mrb[0].mxu0
    %553 = vdwg.mxu0
    %v554 = vld [vmem:[%s7] sm:$0xf]
    %v555 = vld [vmem:[%s7 + $0x4] sm:$0xf]
    %v556 = vld [vmem:[%s7 + $0x8] sm:$0xf]
    %v557 = vld [vmem:[%s7 + $0xc] sm:$0xf]
    %v562 = vunpack.c.l.b16 %v554
    %v563 = vunpack.c.l.b16 %v555
    %v564 = vunpack.c.l.b16 %v556
    %v565 = vunpack.c.l.b16 %v557
    %v566 = vpack.c.b16 %v563, %v562
    %v567 = vpack.c.b16 %v565, %v564
    %570 = vmatprep.subr.bf16.mxu0 0
    %571 = vmatpush1.bf16.msra.mxu0 %v566
    %572 = vmatprep.subr.bf16.mxu0 0
    %573 = vmatpush1.bf16.msra.mxu0 %v567
    %574 = vmatprep.subr.bf16.mxu0 0
    %575 = vmatpush1.bf16.msra.mxu0 0
    %576 = vmatprep.subr.bf16.mxu0 0
    %577 = vmatpush1.bf16.msra.mxu0 0
    %578 = vmatprep.subr.bf16.mxu0 0
    %579 = vmatpush1.bf16.msra.mxu0 0
    %580 = vmatprep.subr.bf16.mxu0 0
    %581 = vmatpush1.bf16.msra.mxu0 0
    %582 = vmatprep.subr.bf16.mxu0 0
    %583 = vmatpush1.bf16.msra.mxu0 0
    %584 = vmatprep.subr.bf16.mxu0 0
    %585 = vmatpush1.bf16.msra.mxu0 0
    %586 = vmatprep.subr.bf16.mxu0 0
    %587 = vmatpush1.bf16.msra.mxu0 0
    %588 = vmatprep.subr.bf16.mxu0 0
    %589 = vmatpush1.bf16.msra.mxu0 0
    %590 = vmatprep.subr.bf16.mxu0 0
    %591 = vmatpush1.bf16.msra.mxu0 0
    %592 = vmatprep.subr.bf16.mxu0 0
    %593 = vmatpush1.bf16.msra.mxu0 0
    %594 = vmatprep.subr.bf16.mxu0 0
    %595 = vmatpush1.bf16.msra.mxu0 0
    %596 = vmatprep.subr.bf16.mxu0 0
    %597 = vmatpush1.bf16.msra.mxu0 0
    %598 = vmatprep.subr.bf16.mxu0 0
    %599 = vmatpush1.bf16.msra.mxu0 0
    %600 = vmatprep.subr.bf16.mxu0 0
    %601 = vmatpush1.bf16.msra.mxu0 0
    %602 = vmatprep.mubr.bf16.mxu0 0
    %603 = vmatmul.mubr.bf16.gmra.mrb[0].mxu0 %v454
    %v604 = vpop.f32.mrb[0].mxu0
    %v605 = vadd.f32 0.0, %v604
    %v606 = vpop.f32.mrb[0].mxu0
    %v607 = vpop.f32.mrb[0].mxu0
    %v608 = vadd.f32 0.0, %v607
    %v609 = vpop.f32.mrb[0].mxu0
    %610 = vdwg.mxu0
    %v611 = vld [vmem:[%s13] sm:$0xff]
    %v612 = vld [vmem:[%s13 + $0x8] sm:$0xff]
    %v613 = vld [vmem:[%s14] sm:$0xff]
    %v614 = vld [vmem:[%s14 + $0x8] sm:$0xff]
    %v615 = vld [vmem:[%s12] sm:$0xff]
    %v616 = vld [vmem:[%s12 + $0x8] sm:$0xff]
    %v617 = vld [vmem:[%s12 + $0x10] sm:$0xff]
    %v618 = vld [vmem:[%s12 + $0x18] sm:$0xff]
    %v619 = vmul.f32 %v491, %v611
    %v620 = vmul.f32 %v494, %v612
    %v622 = vsel %vm100, %v491, 0
    %v625 = vsel %vm100, %v494, 0
    %627 = vmatprep.subr.mxu0 0.0
    %628 = vmatpush1.msra.mxu0 %v615
    %629 = vmatprep.subr.mxu0 0.0
    %630 = vmatpush1.msra.mxu0 %v616
    %631 = vmatprep.subr.mxu0 0.0
    %632 = vmatpush1.msra.mxu0 %v617
    %633 = vmatprep.subr.mxu0 0.0
    %634 = vmatpush1.msra.mxu0 %v618
    %635 = vmatprep.subr.mxu0 0.0
    %636 = vmatpush1.msra.mxu0 0.0
    %637 = vmatprep.subr.mxu0 0.0
    %638 = vmatpush1.msra.mxu0 0.0
    %639 = vmatprep.subr.mxu0 0.0
    %640 = vmatpush1.msra.mxu0 0.0
    %641 = vmatprep.subr.mxu0 0.0
    %642 = vmatpush1.msra.mxu0 0.0
    %643 = vmatprep.subr.mxu0 0.0
    %644 = vmatpush1.msra.mxu0 0.0
    %645 = vmatprep.subr.mxu0 0.0
    %646 = vmatpush1.msra.mxu0 0.0
    %647 = vmatprep.subr.mxu0 0.0
    %648 = vmatpush1.msra.mxu0 0.0
    %649 = vmatprep.subr.mxu0 0.0
    %650 = vmatpush1.msra.mxu0 0.0
    %651 = vmatprep.subr.mxu0 0.0
    %652 = vmatpush1.msra.mxu0 0.0
    %653 = vmatprep.subr.mxu0 0.0
    %654 = vmatpush1.msra.mxu0 0.0
    %655 = vmatprep.subr.mxu0 0.0
    %656 = vmatpush1.msra.mxu0 0.0
    %657 = vmatprep.subr.mxu0 0.0
    %658 = vmatpush1.msra.mxu0 0.0
    %659 = vmatprep.subr.mxu0 0.0
    %660 = vmatpush1.msra.mxu0 0.0
    %661 = vmatprep.subr.mxu0 0.0
    %662 = vmatpush1.msra.mxu0 0.0
    %663 = vmatprep.subr.mxu0 0.0
    %664 = vmatpush1.msra.mxu0 0.0
    %665 = vmatprep.subr.mxu0 0.0
    %666 = vmatpush1.msra.mxu0 0.0
    %667 = vmatprep.subr.mxu0 0.0
    %668 = vmatpush1.msra.mxu0 0.0
    %669 = vmatprep.subr.mxu0 0.0
    %670 = vmatpush1.msra.mxu0 0.0
    %671 = vmatprep.subr.mxu0 0.0
    %672 = vmatpush1.msra.mxu0 0.0
    %673 = vmatprep.subr.mxu0 0.0
    %674 = vmatpush1.msra.mxu0 0.0
    %675 = vmatprep.subr.mxu0 0.0
    %676 = vmatpush1.msra.mxu0 0.0
    %677 = vmatprep.subr.mxu0 0.0
    %678 = vmatpush1.msra.mxu0 0.0
    %679 = vmatprep.subr.mxu0 0.0
    %680 = vmatpush1.msra.mxu0 0.0
    %681 = vmatprep.subr.mxu0 0.0
    %682 = vmatpush1.msra.mxu0 0.0
    %683 = vmatprep.subr.mxu0 0.0
    %684 = vmatpush1.msra.mxu0 0.0
    %685 = vmatprep.subr.mxu0 0.0
    %686 = vmatpush1.msra.mxu0 0.0
    %687 = vmatprep.subr.mxu0 0.0
    %688 = vmatpush1.msra.mxu0 0.0
    %689 = vmatprep.subr.mxu0 0.0
    %690 = vmatpush1.msra.mxu0 0.0
    %691 = vmatprep.mubr.f32.mxu0 0.0
    %692 = vmatmul.mubr.f32.gmra.mrb[0].mxu0 %v622
    %v693 = vpop.f32.mrb[0].mxu0
    %v694 = vadd.f32 0.0, %v693
    %v695 = vpop.f32.mrb[0].mxu0
    %696 = vmatprep.mubr.f32.mxu0 0.0
    %697 = vmatmul.mubr.f32.gmra.mrb[0].mxu0 %v625
    %v698 = vpop.f32.mrb[0].mxu0
    %v699 = vadd.f32 0.0, %v698
    %v700 = vpop.f32.mrb[0].mxu0
    %701 = vdwg.mxu0
    %v702 = vmul.f32 %v694, %v613
    %v703 = vmul.f32 %v699, %v614
    %v704 = vadd.f32 %v619, %v702
    %v705 = vadd.f32 %v620, %v703
    %v706 = vmul.f32 %v548, %v611
    %v707 = vmul.f32 %v551, %v612
    %v709 = vsel %vm100, %v548, 0
    %v712 = vsel %vm100, %v551, 0
    %714 = vmatprep.subr.mxu0 0.0
    %715 = vmatpush1.msra.mxu0 %v615
    %716 = vmatprep.subr.mxu0 0.0
    %717 = vmatpush1.msra.mxu0 %v616
    %718 = vmatprep.subr.mxu0 0.0
    %719 = vmatpush1.msra.mxu0 %v617
    %720 = vmatprep.subr.mxu0 0.0
    %721 = vmatpush1.msra.mxu0 %v618
    %722 = vmatprep.subr.mxu0 0.0
    %723 = vmatpush1.msra.mxu0 0.0
    %724 = vmatprep.subr.mxu0 0.0
    %725 = vmatpush1.msra.mxu0 0.0
    %726 = vmatprep.subr.mxu0 0.0
    %727 = vmatpush1.msra.mxu0 0.0
    %728 = vmatprep.subr.mxu0 0.0
    %729 = vmatpush1.msra.mxu0 0.0
    %730 = vmatprep.subr.mxu0 0.0
    %731 = vmatpush1.msra.mxu0 0.0
    %732 = vmatprep.subr.mxu0 0.0
    %733 = vmatpush1.msra.mxu0 0.0
    %734 = vmatprep.subr.mxu0 0.0
    %735 = vmatpush1.msra.mxu0 0.0
    %736 = vmatprep.subr.mxu0 0.0
    %737 = vmatpush1.msra.mxu0 0.0
    %738 = vmatprep.subr.mxu0 0.0
    %739 = vmatpush1.msra.mxu0 0.0
    %740 = vmatprep.subr.mxu0 0.0
    %741 = vmatpush1.msra.mxu0 0.0
    %742 = vmatprep.subr.mxu0 0.0
    %743 = vmatpush1.msra.mxu0 0.0
    %744 = vmatprep.subr.mxu0 0.0
    %745 = vmatpush1.msra.mxu0 0.0
    %746 = vmatprep.subr.mxu0 0.0
    %747 = vmatpush1.msra.mxu0 0.0
    %748 = vmatprep.subr.mxu0 0.0
    %749 = vmatpush1.msra.mxu0 0.0
    %750 = vmatprep.subr.mxu0 0.0
    %751 = vmatpush1.msra.mxu0 0.0
    %752 = vmatprep.subr.mxu0 0.0
    %753 = vmatpush1.msra.mxu0 0.0
    %754 = vmatprep.subr.mxu0 0.0
    %755 = vmatpush1.msra.mxu0 0.0
    %756 = vmatprep.subr.mxu0 0.0
    %757 = vmatpush1.msra.mxu0 0.0
    %758 = vmatprep.subr.mxu0 0.0
    %759 = vmatpush1.msra.mxu0 0.0
    %760 = vmatprep.subr.mxu0 0.0
    %761 = vmatpush1.msra.mxu0 0.0
    %762 = vmatprep.subr.mxu0 0.0
    %763 = vmatpush1.msra.mxu0 0.0
    %764 = vmatprep.subr.mxu0 0.0
    %765 = vmatpush1.msra.mxu0 0.0
    %766 = vmatprep.subr.mxu0 0.0
    %767 = vmatpush1.msra.mxu0 0.0
    %768 = vmatprep.subr.mxu0 0.0
    %769 = vmatpush1.msra.mxu0 0.0
    %770 = vmatprep.subr.mxu0 0.0
    %771 = vmatpush1.msra.mxu0 0.0
    %772 = vmatprep.subr.mxu0 0.0
    %773 = vmatpush1.msra.mxu0 0.0
    %774 = vmatprep.subr.mxu0 0.0
    %775 = vmatpush1.msra.mxu0 0.0
    %776 = vmatprep.subr.mxu0 0.0
    %777 = vmatpush1.msra.mxu0 0.0
    %778 = vmatprep.mubr.f32.mxu0 0.0
    %779 = vmatmul.mubr.f32.gmra.mrb[0].mxu0 %v709
    %v780 = vpop.f32.mrb[0].mxu0
    %v781 = vadd.f32 0.0, %v780
    %v782 = vpop.f32.mrb[0].mxu0
    %783 = vmatprep.mubr.f32.mxu0 0.0
    %784 = vmatmul.mubr.f32.gmra.mrb[0].mxu0 %v712
    %v785 = vpop.f32.mrb[0].mxu0
    %v786 = vadd.f32 0.0, %v785
    %v787 = vpop.f32.mrb[0].mxu0
    %788 = vdwg.mxu0
    %v789 = vmul.f32 %v781, %v613
    %v790 = vmul.f32 %v786, %v614
    %v791 = vadd.f32 %v706, %v789
    %v792 = vadd.f32 %v707, %v790
    %v793 = vld [vmem:[%s15] sm:$0x1]
    %v794 = vld [vmem:[%s15 + $0x1] sm:$0x1]
    %v795 = vld [vmem:[%s15 + $0x2] sm:$0x1]
    %v796 = vld [vmem:[%s15 + $0x3] sm:$0x1]
    %v801 = vlaneseq
    %v802 = vshrl.u32 %v801, 7
    %v803 = vsub.s32 0, %v802
    %v804 = vrot.slane %v793, %v803
    %v805 = vlaneseq
    %v806 = vshrl.u32 %v805, 7
    %v807 = vsub.s32 0, %v806
    %v808 = vrot.slane %v794, %v807
    %v809 = vlaneseq
    %v810 = vshrl.u32 %v809, 7
    %v811 = vsub.s32 0, %v810
    %v812 = vrot.slane %v795, %v811
    %v813 = vlaneseq
    %v814 = vshrl.u32 %v813, 7
    %v815 = vsub.s32 0, %v814
    %v816 = vrot.slane %v796, %v815
    %v821 = vmul.f32 %v704, %v804
    %v822 = vmul.f32 %v705, %v804
    %v823 = vmul.f32 %v704, %v808
    %v824 = vmul.f32 %v705, %v808
    %v825 = vmul.f32 %v704, %v812
    %v826 = vmul.f32 %v705, %v812
    %v827 = vmul.f32 %v704, %v816
    %v828 = vmul.f32 %v705, %v816
    %v829 = vmul.f32 %v791, %v804
    %v830 = vmul.f32 %v792, %v804
    %v831 = vmul.f32 %v791, %v808
    %v832 = vmul.f32 %v792, %v808
    %v833 = vmul.f32 %v791, %v812
    %v834 = vmul.f32 %v792, %v812
    %v835 = vmul.f32 %v791, %v816
    %v836 = vmul.f32 %v792, %v816
    %v837 = vmul.f32 %v605, %v804
    %v838 = vmul.f32 %v608, %v804
    %v839 = vmul.f32 %v605, %v808
    %v840 = vmul.f32 %v608, %v808
    %v841 = vmul.f32 %v605, %v812
    %v842 = vmul.f32 %v608, %v812
    %v843 = vmul.f32 %v605, %v816
    %v844 = vmul.f32 %v608, %v816
    %v846 = vsel %vm100, %v821, 0
    %v849 = vsel %vm100, %v822, 0
    %v852 = vsel %vm100, %v829, 0
    %v855 = vsel %vm100, %v830, 0
    %857 = vmatprep.subr.mxu0 0.0
    %858 = vmatpush1.xpose.msra.mxu0 %v852
    %859 = vmatprep.subr.mxu0 0.0
    %860 = vmatpush1.xpose.msra.mxu0 %v855
    %861 = vmatprep.subr.mxu0 0.0
    %862 = vmatpush1.xpose.msra.mxu0 0.0
    %863 = vmatprep.subr.mxu0 0.0
    %864 = vmatpush1.xpose.msra.mxu0 0.0
    %865 = vmatprep.subr.mxu0 0.0
    %866 = vmatpush1.xpose.msra.mxu0 0.0
    %867 = vmatprep.subr.mxu0 0.0
    %868 = vmatpush1.xpose.msra.mxu0 0.0
    %869 = vmatprep.subr.mxu0 0.0
    %870 = vmatpush1.xpose.msra.mxu0 0.0
    %871 = vmatprep.subr.mxu0 0.0
    %872 = vmatpush1.xpose.msra.mxu0 0.0
    %873 = vmatprep.subr.mxu0 0.0
    %874 = vmatpush1.xpose.msra.mxu0 0.0
    %875 = vmatprep.subr.mxu0 0.0
    %876 = vmatpush1.xpose.msra.mxu0 0.0
    %877 = vmatprep.subr.mxu0 0.0
    %878 = vmatpush1.xpose.msra.mxu0 0.0
    %879 = vmatprep.subr.mxu0 0.0
    %880 = vmatpush1.xpose.msra.mxu0 0.0
    %881 = vmatprep.subr.mxu0 0.0
    %882 = vmatpush1.xpose.msra.mxu0 0.0
    %883 = vmatprep.subr.mxu0 0.0
    %884 = vmatpush1.xpose.msra.mxu0 0.0
    %885 = vmatprep.subr.mxu0 0.0
    %886 = vmatpush1.xpose.msra.mxu0 0.0
    %887 = vmatprep.subr.mxu0 0.0
    %888 = vmatpush1.xpose.msra.mxu0 0.0
    %889 = vmatprep.subr.mxu0 0.0
    %890 = vmatpush1.xpose.msra.mxu0 0.0
    %891 = vmatprep.subr.mxu0 0.0
    %892 = vmatpush1.xpose.msra.mxu0 0.0
    %893 = vmatprep.subr.mxu0 0.0
    %894 = vmatpush1.xpose.msra.mxu0 0.0
    %895 = vmatprep.subr.mxu0 0.0
    %896 = vmatpush1.xpose.msra.mxu0 0.0
    %897 = vmatprep.subr.mxu0 0.0
    %898 = vmatpush1.xpose.msra.mxu0 0.0
    %899 = vmatprep.subr.mxu0 0.0
    %900 = vmatpush1.xpose.msra.mxu0 0.0
    %901 = vmatprep.subr.mxu0 0.0
    %902 = vmatpush1.xpose.msra.mxu0 0.0
    %903 = vmatprep.subr.mxu0 0.0
    %904 = vmatpush1.xpose.msra.mxu0 0.0
    %905 = vmatprep.subr.mxu0 0.0
    %906 = vmatpush1.xpose.msra.mxu0 0.0
    %907 = vmatprep.subr.mxu0 0.0
    %908 = vmatpush1.xpose.msra.mxu0 0.0
    %909 = vmatprep.subr.mxu0 0.0
    %910 = vmatpush1.xpose.msra.mxu0 0.0
    %911 = vmatprep.subr.mxu0 0.0
    %912 = vmatpush1.xpose.msra.mxu0 0.0
    %913 = vmatprep.subr.mxu0 0.0
    %914 = vmatpush1.xpose.msra.mxu0 0.0
    %915 = vmatprep.subr.mxu0 0.0
    %916 = vmatpush1.xpose.msra.mxu0 0.0
    %917 = vmatprep.subr.mxu0 0.0
    %918 = vmatpush1.xpose.msra.mxu0 0.0
    %919 = vmatprep.subr.mxu0 0.0
    %920 = vmatpush1.xpose.msra.mxu0 0.0
    %921 = vmatprep.mubr.f32.mxu0 0.0
    %922 = vmatmul.mubr.f32.gmra.mrb[0].mxu0 %v846
    %v923 = vpop.f32.mrb[0].mxu0
    %v924 = vadd.f32 0.0, %v923
    %v925 = vpop.f32.mrb[0].mxu0
    %926 = vmatprep.mubr.f32.mxu0 0.0
    %927 = vmatmul.mubr.f32.gmra.mrb[0].mxu0 %v849
    %v928 = vpop.f32.mrb[0].mxu0
    %v929 = vadd.f32 0.0, %v928
    %v930 = vpop.f32.mrb[0].mxu0
    %931 = vdwg.mxu0
    %v933 = vsel %vm100, %v823, 0
    %v936 = vsel %vm100, %v824, 0
    %v939 = vsel %vm100, %v831, 0
    %v942 = vsel %vm100, %v832, 0
    %944 = vmatprep.subr.mxu0 0.0
    %945 = vmatpush1.xpose.msra.mxu0 %v939
    %946 = vmatprep.subr.mxu0 0.0
    %947 = vmatpush1.xpose.msra.mxu0 %v942
    %948 = vmatprep.subr.mxu0 0.0
    %949 = vmatpush1.xpose.msra.mxu0 0.0
    %950 = vmatprep.subr.mxu0 0.0
    %951 = vmatpush1.xpose.msra.mxu0 0.0
    %952 = vmatprep.subr.mxu0 0.0
    %953 = vmatpush1.xpose.msra.mxu0 0.0
    %954 = vmatprep.subr.mxu0 0.0
    %955 = vmatpush1.xpose.msra.mxu0 0.0
    %956 = vmatprep.subr.mxu0 0.0
    %957 = vmatpush1.xpose.msra.mxu0 0.0
    %958 = vmatprep.subr.mxu0 0.0
    %959 = vmatpush1.xpose.msra.mxu0 0.0
    %960 = vmatprep.subr.mxu0 0.0
    %961 = vmatpush1.xpose.msra.mxu0 0.0
    %962 = vmatprep.subr.mxu0 0.0
    %963 = vmatpush1.xpose.msra.mxu0 0.0
    %964 = vmatprep.subr.mxu0 0.0
    %965 = vmatpush1.xpose.msra.mxu0 0.0
    %966 = vmatprep.subr.mxu0 0.0
    %967 = vmatpush1.xpose.msra.mxu0 0.0
    %968 = vmatprep.subr.mxu0 0.0
    %969 = vmatpush1.xpose.msra.mxu0 0.0
    %970 = vmatprep.subr.mxu0 0.0
    %971 = vmatpush1.xpose.msra.mxu0 0.0
    %972 = vmatprep.subr.mxu0 0.0
    %973 = vmatpush1.xpose.msra.mxu0 0.0
    %974 = vmatprep.subr.mxu0 0.0
    %975 = vmatpush1.xpose.msra.mxu0 0.0
    %976 = vmatprep.subr.mxu0 0.0
    %977 = vmatpush1.xpose.msra.mxu0 0.0
    %978 = vmatprep.subr.mxu0 0.0
    %979 = vmatpush1.xpose.msra.mxu0 0.0
    %980 = vmatprep.subr.mxu0 0.0
    %981 = vmatpush1.xpose.msra.mxu0 0.0
    %982 = vmatprep.subr.mxu0 0.0
    %983 = vmatpush1.xpose.msra.mxu0 0.0
    %984 = vmatprep.subr.mxu0 0.0
    %985 = vmatpush1.xpose.msra.mxu0 0.0
    %986 = vmatprep.subr.mxu0 0.0
    %987 = vmatpush1.xpose.msra.mxu0 0.0
    %988 = vmatprep.subr.mxu0 0.0
    %989 = vmatpush1.xpose.msra.mxu0 0.0
    %990 = vmatprep.subr.mxu0 0.0
    %991 = vmatpush1.xpose.msra.mxu0 0.0
    %992 = vmatprep.subr.mxu0 0.0
    %993 = vmatpush1.xpose.msra.mxu0 0.0
    %994 = vmatprep.subr.mxu0 0.0
    %995 = vmatpush1.xpose.msra.mxu0 0.0
    %996 = vmatprep.subr.mxu0 0.0
    %997 = vmatpush1.xpose.msra.mxu0 0.0
    %998 = vmatprep.subr.mxu0 0.0
    %999 = vmatpush1.xpose.msra.mxu0 0.0
    %1000 = vmatprep.subr.mxu0 0.0
    %1001 = vmatpush1.xpose.msra.mxu0 0.0
    %1002 = vmatprep.subr.mxu0 0.0
    %1003 = vmatpush1.xpose.msra.mxu0 0.0
    %1004 = vmatprep.subr.mxu0 0.0
    %1005 = vmatpush1.xpose.msra.mxu0 0.0
    %1006 = vmatprep.subr.mxu0 0.0
    %1007 = vmatpush1.xpose.msra.mxu0 0.0
    %1008 = vmatprep.mubr.f32.mxu0 0.0
    %1009 = vmatmul.mubr.f32.gmra.mrb[0].mxu0 %v933
    %v1010 = vpop.f32.mrb[0].mxu0
    %v1011 = vadd.f32 0.0, %v1010
    %v1012 = vpop.f32.mrb[0].mxu0
    %1013 = vmatprep.mubr.f32.mxu0 0.0
    %1014 = vmatmul.mubr.f32.gmra.mrb[0].mxu0 %v936
    %v1015 = vpop.f32.mrb[0].mxu0
    %v1016 = vadd.f32 0.0, %v1015
    %v1017 = vpop.f32.mrb[0].mxu0
    %1018 = vdwg.mxu0
    %v1020 = vsel %vm100, %v825, 0
    %v1023 = vsel %vm100, %v826, 0
    %v1026 = vsel %vm100, %v833, 0
    %v1029 = vsel %vm100, %v834, 0
    %1031 = vmatprep.subr.mxu0 0.0
    %1032 = vmatpush1.xpose.msra.mxu0 %v1026
    %1033 = vmatprep.subr.mxu0 0.0
    %1034 = vmatpush1.xpose.msra.mxu0 %v1029
    %1035 = vmatprep.subr.mxu0 0.0
    %1036 = vmatpush1.xpose.msra.mxu0 0.0
    %1037 = vmatprep.subr.mxu0 0.0
    %1038 = vmatpush1.xpose.msra.mxu0 0.0
    %1039 = vmatprep.subr.mxu0 0.0
    %1040 = vmatpush1.xpose.msra.mxu0 0.0
    %1041 = vmatprep.subr.mxu0 0.0
    %1042 = vmatpush1.xpose.msra.mxu0 0.0
    %1043 = vmatprep.subr.mxu0 0.0
    %1044 = vmatpush1.xpose.msra.mxu0 0.0
    %1045 = vmatprep.subr.mxu0 0.0
    %1046 = vmatpush1.xpose.msra.mxu0 0.0
    %1047 = vmatprep.subr.mxu0 0.0
    %1048 = vmatpush1.xpose.msra.mxu0 0.0
    %1049 = vmatprep.subr.mxu0 0.0
    %1050 = vmatpush1.xpose.msra.mxu0 0.0
    %1051 = vmatprep.subr.mxu0 0.0
    %1052 = vmatpush1.xpose.msra.mxu0 0.0
    %1053 = vmatprep.subr.mxu0 0.0
    %1054 = vmatpush1.xpose.msra.mxu0 0.0
    %1055 = vmatprep.subr.mxu0 0.0
    %1056 = vmatpush1.xpose.msra.mxu0 0.0
    %1057 = vmatprep.subr.mxu0 0.0
    %1058 = vmatpush1.xpose.msra.mxu0 0.0
    %1059 = vmatprep.subr.mxu0 0.0
    %1060 = vmatpush1.xpose.msra.mxu0 0.0
    %1061 = vmatprep.subr.mxu0 0.0
    %1062 = vmatpush1.xpose.msra.mxu0 0.0
    %1063 = vmatprep.subr.mxu0 0.0
    %1064 = vmatpush1.xpose.msra.mxu0 0.0
    %1065 = vmatprep.subr.mxu0 0.0
    %1066 = vmatpush1.xpose.msra.mxu0 0.0
    %1067 = vmatprep.subr.mxu0 0.0
    %1068 = vmatpush1.xpose.msra.mxu0 0.0
    %1069 = vmatprep.subr.mxu0 0.0
    %1070 = vmatpush1.xpose.msra.mxu0 0.0
    %1071 = vmatprep.subr.mxu0 0.0
    %1072 = vmatpush1.xpose.msra.mxu0 0.0
    %1073 = vmatprep.subr.mxu0 0.0
    %1074 = vmatpush1.xpose.msra.mxu0 0.0
    %1075 = vmatprep.subr.mxu0 0.0
    %1076 = vmatpush1.xpose.msra.mxu0 0.0
    %1077 = vmatprep.subr.mxu0 0.0
    %1078 = vmatpush1.xpose.msra.mxu0 0.0
    %1079 = vmatprep.subr.mxu0 0.0
    %1080 = vmatpush1.xpose.msra.mxu0 0.0
    %1081 = vmatprep.subr.mxu0 0.0
    %1082 = vmatpush1.xpose.msra.mxu0 0.0
    %1083 = vmatprep.subr.mxu0 0.0
    %1084 = vmatpush1.xpose.msra.mxu0 0.0
    %1085 = vmatprep.subr.mxu0 0.0
    %1086 = vmatpush1.xpose.msra.mxu0 0.0
    %1087 = vmatprep.subr.mxu0 0.0
    %1088 = vmatpush1.xpose.msra.mxu0 0.0
    %1089 = vmatprep.subr.mxu0 0.0
    %1090 = vmatpush1.xpose.msra.mxu0 0.0
    %1091 = vmatprep.subr.mxu0 0.0
    %1092 = vmatpush1.xpose.msra.mxu0 0.0
    %1093 = vmatprep.subr.mxu0 0.0
    %1094 = vmatpush1.xpose.msra.mxu0 0.0
    %1095 = vmatprep.mubr.f32.mxu0 0.0
    %1096 = vmatmul.mubr.f32.gmra.mrb[0].mxu0 %v1020
    %v1097 = vpop.f32.mrb[0].mxu0
    %v1098 = vadd.f32 0.0, %v1097
    %v1099 = vpop.f32.mrb[0].mxu0
    %1100 = vmatprep.mubr.f32.mxu0 0.0
    %1101 = vmatmul.mubr.f32.gmra.mrb[0].mxu0 %v1023
    %v1102 = vpop.f32.mrb[0].mxu0
    %v1103 = vadd.f32 0.0, %v1102
    %v1104 = vpop.f32.mrb[0].mxu0
    %1105 = vdwg.mxu0
    %v1107 = vsel %vm100, %v827, 0
    %v1110 = vsel %vm100, %v828, 0
    %v1113 = vsel %vm100, %v835, 0
    %v1116 = vsel %vm100, %v836, 0
    %1118 = vmatprep.subr.mxu0 0.0
    %1119 = vmatpush1.xpose.msra.mxu0 %v1113
    %1120 = vmatprep.subr.mxu0 0.0
    %1121 = vmatpush1.xpose.msra.mxu0 %v1116
    %1122 = vmatprep.subr.mxu0 0.0
    %1123 = vmatpush1.xpose.msra.mxu0 0.0
    %1124 = vmatprep.subr.mxu0 0.0
    %1125 = vmatpush1.xpose.msra.mxu0 0.0
    %1126 = vmatprep.subr.mxu0 0.0
    %1127 = vmatpush1.xpose.msra.mxu0 0.0
    %1128 = vmatprep.subr.mxu0 0.0
    %1129 = vmatpush1.xpose.msra.mxu0 0.0
    %1130 = vmatprep.subr.mxu0 0.0
    %1131 = vmatpush1.xpose.msra.mxu0 0.0
    %1132 = vmatprep.subr.mxu0 0.0
    %1133 = vmatpush1.xpose.msra.mxu0 0.0
    %1134 = vmatprep.subr.mxu0 0.0
    %1135 = vmatpush1.xpose.msra.mxu0 0.0
    %1136 = vmatprep.subr.mxu0 0.0
    %1137 = vmatpush1.xpose.msra.mxu0 0.0
    %1138 = vmatprep.subr.mxu0 0.0
    %1139 = vmatpush1.xpose.msra.mxu0 0.0
    %1140 = vmatprep.subr.mxu0 0.0
    %1141 = vmatpush1.xpose.msra.mxu0 0.0
    %1142 = vmatprep.subr.mxu0 0.0
    %1143 = vmatpush1.xpose.msra.mxu0 0.0
    %1144 = vmatprep.subr.mxu0 0.0
    %1145 = vmatpush1.xpose.msra.mxu0 0.0
    %1146 = vmatprep.subr.mxu0 0.0
    %1147 = vmatpush1.xpose.msra.mxu0 0.0
    %1148 = vmatprep.subr.mxu0 0.0
    %1149 = vmatpush1.xpose.msra.mxu0 0.0
    %1150 = vmatprep.subr.mxu0 0.0
    %1151 = vmatpush1.xpose.msra.mxu0 0.0
    %1152 = vmatprep.subr.mxu0 0.0
    %1153 = vmatpush1.xpose.msra.mxu0 0.0
    %1154 = vmatprep.subr.mxu0 0.0
    %1155 = vmatpush1.xpose.msra.mxu0 0.0
    %1156 = vmatprep.subr.mxu0 0.0
    %1157 = vmatpush1.xpose.msra.mxu0 0.0
    %1158 = vmatprep.subr.mxu0 0.0
    %1159 = vmatpush1.xpose.msra.mxu0 0.0
    %1160 = vmatprep.subr.mxu0 0.0
    %1161 = vmatpush1.xpose.msra.mxu0 0.0
    %1162 = vmatprep.subr.mxu0 0.0
    %1163 = vmatpush1.xpose.msra.mxu0 0.0
    %1164 = vmatprep.subr.mxu0 0.0
    %1165 = vmatpush1.xpose.msra.mxu0 0.0
    %1166 = vmatprep.subr.mxu0 0.0
    %1167 = vmatpush1.xpose.msra.mxu0 0.0
    %1168 = vmatprep.subr.mxu0 0.0
    %1169 = vmatpush1.xpose.msra.mxu0 0.0
    %1170 = vmatprep.subr.mxu0 0.0
    %1171 = vmatpush1.xpose.msra.mxu0 0.0
    %1172 = vmatprep.subr.mxu0 0.0
    %1173 = vmatpush1.xpose.msra.mxu0 0.0
    %1174 = vmatprep.subr.mxu0 0.0
    %1175 = vmatpush1.xpose.msra.mxu0 0.0
    %1176 = vmatprep.subr.mxu0 0.0
    %1177 = vmatpush1.xpose.msra.mxu0 0.0
    %1178 = vmatprep.subr.mxu0 0.0
    %1179 = vmatpush1.xpose.msra.mxu0 0.0
    %1180 = vmatprep.subr.mxu0 0.0
    %1181 = vmatpush1.xpose.msra.mxu0 0.0
    %1182 = vmatprep.mubr.f32.mxu0 0.0
    %1183 = vmatmul.mubr.f32.gmra.mrb[0].mxu0 %v1107
    %v1184 = vpop.f32.mrb[0].mxu0
    %v1185 = vadd.f32 0.0, %v1184
    %v1186 = vpop.f32.mrb[0].mxu0
    %1187 = vmatprep.mubr.f32.mxu0 0.0
    %1188 = vmatmul.mubr.f32.gmra.mrb[0].mxu0 %v1110
    %v1189 = vpop.f32.mrb[0].mxu0
    %v1190 = vadd.f32 0.0, %v1189
    %v1191 = vpop.f32.mrb[0].mxu0
    %1192 = vdwg.mxu0
    %v1193 = vmul.f32 %v924, 0.35355338
    %v1194 = vmul.f32 %v929, 0.35355338
    %v1195 = vmul.f32 %v1011, 0.35355338
    %v1196 = vmul.f32 %v1016, 0.35355338
    %v1197 = vmul.f32 %v1098, 0.35355338
    %v1198 = vmul.f32 %v1103, 0.35355338
    %v1199 = vmul.f32 %v1185, 0.35355338
    %v1200 = vmul.f32 %v1190, 0.35355338
    %v1201 = vld [vmem:[%s16] sm:$0xff]
    %v1202 = vld [vmem:[%s16 + $0x8] sm:$0xff]
    %v1203 = vadd.f32 %v1193, %v1201
    %v1204 = vadd.f32 %v1194, %v1202
    %v1205 = vadd.f32 %v1195, %v1201
    %v1206 = vadd.f32 %v1196, %v1202
    %v1207 = vadd.f32 %v1197, %v1201
    %v1208 = vadd.f32 %v1198, %v1202
    %v1209 = vadd.f32 %v1199, %v1201
    %v1210 = vadd.f32 %v1200, %v1202
    %vm1211 = vcmask 130048
    %v1212 = vsel %vm1211, %v1203, -inf
    %1213 = vmax.xlane.f32.xlu0 %v1212
    %v1214 = vpop.xlane.xlu0 %1213
    %v1215 = vsel %vm1211, %v1204, -inf
    %1216 = vmax.xlane.f32.xlu0 %v1215
    %v1217 = vpop.xlane.xlu0 %1216
    %v1218 = vsel %vm1211, %v1205, -inf
    %1219 = vmax.xlane.f32.xlu0 %v1218
    %v1220 = vpop.xlane.xlu0 %1219
    %v1221 = vsel %vm1211, %v1206, -inf
    %1222 = vmax.xlane.f32.xlu0 %v1221
    %v1223 = vpop.xlane.xlu0 %1222
    %v1224 = vsel %vm1211, %v1207, -inf
    %1225 = vmax.xlane.f32.xlu0 %v1224
    %v1226 = vpop.xlane.xlu0 %1225
    %v1227 = vsel %vm1211, %v1208, -inf
    %1228 = vmax.xlane.f32.xlu0 %v1227
    %v1229 = vpop.xlane.xlu0 %1228
    %v1230 = vsel %vm1211, %v1209, -inf
    %1231 = vmax.xlane.f32.xlu0 %v1230
    %v1232 = vpop.xlane.xlu0 %1231
    %v1233 = vsel %vm1211, %v1210, -inf
    %1234 = vmax.xlane.f32.xlu0 %v1233
    %v1235 = vpop.xlane.xlu0 %1234
    %v1236 = vsub.f32 %v1203, %v1214
    %v1237 = vsub.f32 %v1204, %v1217
    %v1238 = vsub.f32 %v1205, %v1220
    %v1239 = vsub.f32 %v1206, %v1223
    %v1240 = vsub.f32 %v1207, %v1226
    %v1241 = vsub.f32 %v1208, %v1229
    %v1242 = vsub.f32 %v1209, %v1232
    %v1243 = vsub.f32 %v1210, %v1235
    %v1244 = vmul.f32 %v1236, 1.442695
    %v1245 = vpow.pop %v1244
    %v1246 = vmul.f32 %v1237, 1.442695
    %v1247 = vpow.pop %v1246
    %v1248 = vmul.f32 %v1238, 1.442695
    %v1249 = vpow.pop %v1248
    %v1250 = vmul.f32 %v1239, 1.442695
    %v1251 = vpow.pop %v1250
    %v1252 = vmul.f32 %v1240, 1.442695
    %v1253 = vpow.pop %v1252
    %v1254 = vmul.f32 %v1241, 1.442695
    %v1255 = vpow.pop %v1254
    %v1256 = vmul.f32 %v1242, 1.442695
    %v1257 = vpow.pop %v1256
    %v1258 = vmul.f32 %v1243, 1.442695
    %v1259 = vpow.pop %v1258
    %v1260 = vsel %vm1211, %v1245, 0.0
    %1261 = vadd.xlane.f32.xlu0 %v1260
    %v1262 = vpop.xlane.xlu0 %1261
    %v1263 = vsel %vm1211, %v1247, 0.0
    %1264 = vadd.xlane.f32.xlu0 %v1263
    %v1265 = vpop.xlane.xlu0 %1264
    %v1266 = vsel %vm1211, %v1249, 0.0
    %1267 = vadd.xlane.f32.xlu0 %v1266
    %v1268 = vpop.xlane.xlu0 %1267
    %v1269 = vsel %vm1211, %v1251, 0.0
    %1270 = vadd.xlane.f32.xlu0 %v1269
    %v1271 = vpop.xlane.xlu0 %1270
    %v1272 = vsel %vm1211, %v1253, 0.0
    %1273 = vadd.xlane.f32.xlu0 %v1272
    %v1274 = vpop.xlane.xlu0 %1273
    %v1275 = vsel %vm1211, %v1255, 0.0
    %1276 = vadd.xlane.f32.xlu0 %v1275
    %v1277 = vpop.xlane.xlu0 %1276
    %v1278 = vsel %vm1211, %v1257, 0.0
    %1279 = vadd.xlane.f32.xlu0 %v1278
    %v1280 = vpop.xlane.xlu0 %1279
    %v1281 = vsel %vm1211, %v1259, 0.0
    %1282 = vadd.xlane.f32.xlu0 %v1281
    %v1283 = vpop.xlane.xlu0 %1282
    %v1284 = vrcp.pop %v1262
    %v1285 = vrcp.pop %v1265
    %v1286 = vrcp.pop %v1268
    %v1287 = vrcp.pop %v1271
    %v1288 = vrcp.pop %v1274
    %v1289 = vrcp.pop %v1277
    %v1290 = vrcp.pop %v1280
    %v1291 = vrcp.pop %v1283
    %v1292 = vmul.f32 %v1245, %v1284
    %v1293 = vmul.f32 %v1247, %v1285
    %v1294 = vmul.f32 %v1249, %v1286
    %v1295 = vmul.f32 %v1251, %v1287
    %v1296 = vmul.f32 %v1253, %v1288
    %v1297 = vmul.f32 %v1255, %v1289
    %v1298 = vmul.f32 %v1257, %v1290
    %v1299 = vmul.f32 %v1259, %v1291
    %v1301 = vsel %vm1211, %v1292, 0
    %v1304 = vsel %vm1211, %v1293, 0
    %1306 = vmatprep.subr.mxu0 0.0
    %1307 = vmatpush1.msra.mxu0 %v837
    %1308 = vmatprep.subr.mxu0 0.0
    %1309 = vmatpush1.msra.mxu0 %v838
    %1310 = vmatprep.subr.mxu0 0.0
    %1311 = vmatpush1.msra.mxu0 0.0
    %1312 = vmatprep.subr.mxu0 0.0
    %1313 = vmatpush1.msra.mxu0 0.0
    %1314 = vmatprep.subr.mxu0 0.0
    %1315 = vmatpush1.msra.mxu0 0.0
    %1316 = vmatprep.subr.mxu0 0.0
    %1317 = vmatpush1.msra.mxu0 0.0
    %1318 = vmatprep.subr.mxu0 0.0
    %1319 = vmatpush1.msra.mxu0 0.0
    %1320 = vmatprep.subr.mxu0 0.0
    %1321 = vmatpush1.msra.mxu0 0.0
    %1322 = vmatprep.subr.mxu0 0.0
    %1323 = vmatpush1.msra.mxu0 0.0
    %1324 = vmatprep.subr.mxu0 0.0
    %1325 = vmatpush1.msra.mxu0 0.0
    %1326 = vmatprep.subr.mxu0 0.0
    %1327 = vmatpush1.msra.mxu0 0.0
    %1328 = vmatprep.subr.mxu0 0.0
    %1329 = vmatpush1.msra.mxu0 0.0
    %1330 = vmatprep.subr.mxu0 0.0
    %1331 = vmatpush1.msra.mxu0 0.0
    %1332 = vmatprep.subr.mxu0 0.0
    %1333 = vmatpush1.msra.mxu0 0.0
    %1334 = vmatprep.subr.mxu0 0.0
    %1335 = vmatpush1.msra.mxu0 0.0
    %1336 = vmatprep.subr.mxu0 0.0
    %1337 = vmatpush1.msra.mxu0 0.0
    %1338 = vmatprep.subr.mxu0 0.0
    %1339 = vmatpush1.msra.mxu0 0.0
    %1340 = vmatprep.subr.mxu0 0.0
    %1341 = vmatpush1.msra.mxu0 0.0
    %1342 = vmatprep.subr.mxu0 0.0
    %1343 = vmatpush1.msra.mxu0 0.0
    %1344 = vmatprep.subr.mxu0 0.0
    %1345 = vmatpush1.msra.mxu0 0.0
    %1346 = vmatprep.subr.mxu0 0.0
    %1347 = vmatpush1.msra.mxu0 0.0
    %1348 = vmatprep.subr.mxu0 0.0
    %1349 = vmatpush1.msra.mxu0 0.0
    %1350 = vmatprep.subr.mxu0 0.0
    %1351 = vmatpush1.msra.mxu0 0.0
    %1352 = vmatprep.subr.mxu0 0.0
    %1353 = vmatpush1.msra.mxu0 0.0
    %1354 = vmatprep.subr.mxu0 0.0
    %1355 = vmatpush1.msra.mxu0 0.0
    %1356 = vmatprep.subr.mxu0 0.0
    %1357 = vmatpush1.msra.mxu0 0.0
    %1358 = vmatprep.subr.mxu0 0.0
    %1359 = vmatpush1.msra.mxu0 0.0
    %1360 = vmatprep.subr.mxu0 0.0
    %1361 = vmatpush1.msra.mxu0 0.0
    %1362 = vmatprep.subr.mxu0 0.0
    %1363 = vmatpush1.msra.mxu0 0.0
    %1364 = vmatprep.subr.mxu0 0.0
    %1365 = vmatpush1.msra.mxu0 0.0
    %1366 = vmatprep.subr.mxu0 0.0
    %1367 = vmatpush1.msra.mxu0 0.0
    %1368 = vmatprep.subr.mxu0 0.0
    %1369 = vmatpush1.msra.mxu0 0.0
    %1370 = vmatprep.mubr.f32.mxu0 0.0
    %1371 = vmatmul.mubr.f32.gmra.mrb[0].mxu0 %v1301
    %v1372 = vpop.f32.mrb[0].mxu0
    %v1373 = vadd.f32 0.0, %v1372
    %v1374 = vpop.f32.mrb[0].mxu0
    %1375 = vmatprep.mubr.f32.mxu0 0.0
    %1376 = vmatmul.mubr.f32.gmra.mrb[0].mxu0 %v1304
    %v1377 = vpop.f32.mrb[0].mxu0
    %v1378 = vadd.f32 0.0, %v1377
    %v1379 = vpop.f32.mrb[0].mxu0
    %1380 = vdwg.mxu0
    %v1382 = vsel %vm1211, %v1294, 0
    %v1385 = vsel %vm1211, %v1295, 0
    %1387 = vmatprep.subr.mxu0 0.0
    %1388 = vmatpush1.msra.mxu0 %v839
    %1389 = vmatprep.subr.mxu0 0.0
    %1390 = vmatpush1.msra.mxu0 %v840
    %1391 = vmatprep.subr.mxu0 0.0
    %1392 = vmatpush1.msra.mxu0 0.0
    %1393 = vmatprep.subr.mxu0 0.0
    %1394 = vmatpush1.msra.mxu0 0.0
    %1395 = vmatprep.subr.mxu0 0.0
    %1396 = vmatpush1.msra.mxu0 0.0
    %1397 = vmatprep.subr.mxu0 0.0
    %1398 = vmatpush1.msra.mxu0 0.0
    %1399 = vmatprep.subr.mxu0 0.0
    %1400 = vmatpush1.msra.mxu0 0.0
    %1401 = vmatprep.subr.mxu0 0.0
    %1402 = vmatpush1.msra.mxu0 0.0
    %1403 = vmatprep.subr.mxu0 0.0
    %1404 = vmatpush1.msra.mxu0 0.0
    %1405 = vmatprep.subr.mxu0 0.0
    %1406 = vmatpush1.msra.mxu0 0.0
    %1407 = vmatprep.subr.mxu0 0.0
    %1408 = vmatpush1.msra.mxu0 0.0
    %1409 = vmatprep.subr.mxu0 0.0
    %1410 = vmatpush1.msra.mxu0 0.0
    %1411 = vmatprep.subr.mxu0 0.0
    %1412 = vmatpush1.msra.mxu0 0.0
    %1413 = vmatprep.subr.mxu0 0.0
    %1414 = vmatpush1.msra.mxu0 0.0
    %1415 = vmatprep.subr.mxu0 0.0
    %1416 = vmatpush1.msra.mxu0 0.0
    %1417 = vmatprep.subr.mxu0 0.0
    %1418 = vmatpush1.msra.mxu0 0.0
    %1419 = vmatprep.subr.mxu0 0.0
    %1420 = vmatpush1.msra.mxu0 0.0
    %1421 = vmatprep.subr.mxu0 0.0
    %1422 = vmatpush1.msra.mxu0 0.0
    %1423 = vmatprep.subr.mxu0 0.0
    %1424 = vmatpush1.msra.mxu0 0.0
    %1425 = vmatprep.subr.mxu0 0.0
    %1426 = vmatpush1.msra.mxu0 0.0
    %1427 = vmatprep.subr.mxu0 0.0
    %1428 = vmatpush1.msra.mxu0 0.0
    %1429 = vmatprep.subr.mxu0 0.0
    %1430 = vmatpush1.msra.mxu0 0.0
    %1431 = vmatprep.subr.mxu0 0.0
    %1432 = vmatpush1.msra.mxu0 0.0
    %1433 = vmatprep.subr.mxu0 0.0
    %1434 = vmatpush1.msra.mxu0 0.0
    %1435 = vmatprep.subr.mxu0 0.0
    %1436 = vmatpush1.msra.mxu0 0.0
    %1437 = vmatprep.subr.mxu0 0.0
    %1438 = vmatpush1.msra.mxu0 0.0
    %1439 = vmatprep.subr.mxu0 0.0
    %1440 = vmatpush1.msra.mxu0 0.0
    %1441 = vmatprep.subr.mxu0 0.0
    %1442 = vmatpush1.msra.mxu0 0.0
    %1443 = vmatprep.subr.mxu0 0.0
    %1444 = vmatpush1.msra.mxu0 0.0
    %1445 = vmatprep.subr.mxu0 0.0
    %1446 = vmatpush1.msra.mxu0 0.0
    %1447 = vmatprep.subr.mxu0 0.0
    %1448 = vmatpush1.msra.mxu0 0.0
    %1449 = vmatprep.subr.mxu0 0.0
    %1450 = vmatpush1.msra.mxu0 0.0
    %1451 = vmatprep.mubr.f32.mxu0 0.0
    %1452 = vmatmul.mubr.f32.gmra.mrb[0].mxu0 %v1382
    %v1453 = vpop.f32.mrb[0].mxu0
    %v1454 = vadd.f32 0.0, %v1453
    %v1455 = vpop.f32.mrb[0].mxu0
    %1456 = vmatprep.mubr.f32.mxu0 0.0
    %1457 = vmatmul.mubr.f32.gmra.mrb[0].mxu0 %v1385
    %v1458 = vpop.f32.mrb[0].mxu0
    %v1459 = vadd.f32 0.0, %v1458
    %v1460 = vpop.f32.mrb[0].mxu0
    %1461 = vdwg.mxu0
    %v1463 = vsel %vm1211, %v1296, 0
    %v1466 = vsel %vm1211, %v1297, 0
    %1468 = vmatprep.subr.mxu0 0.0
    %1469 = vmatpush1.msra.mxu0 %v841
    %1470 = vmatprep.subr.mxu0 0.0
    %1471 = vmatpush1.msra.mxu0 %v842
    %1472 = vmatprep.subr.mxu0 0.0
    %1473 = vmatpush1.msra.mxu0 0.0
    %1474 = vmatprep.subr.mxu0 0.0
    %1475 = vmatpush1.msra.mxu0 0.0
    %1476 = vmatprep.subr.mxu0 0.0
    %1477 = vmatpush1.msra.mxu0 0.0
    %1478 = vmatprep.subr.mxu0 0.0
    %1479 = vmatpush1.msra.mxu0 0.0
    %1480 = vmatprep.subr.mxu0 0.0
    %1481 = vmatpush1.msra.mxu0 0.0
    %1482 = vmatprep.subr.mxu0 0.0
    %1483 = vmatpush1.msra.mxu0 0.0
    %1484 = vmatprep.subr.mxu0 0.0
    %1485 = vmatpush1.msra.mxu0 0.0
    %1486 = vmatprep.subr.mxu0 0.0
    %1487 = vmatpush1.msra.mxu0 0.0
    %1488 = vmatprep.subr.mxu0 0.0
    %1489 = vmatpush1.msra.mxu0 0.0
    %1490 = vmatprep.subr.mxu0 0.0
    %1491 = vmatpush1.msra.mxu0 0.0
    %1492 = vmatprep.subr.mxu0 0.0
    %1493 = vmatpush1.msra.mxu0 0.0
    %1494 = vmatprep.subr.mxu0 0.0
    %1495 = vmatpush1.msra.mxu0 0.0
    %1496 = vmatprep.subr.mxu0 0.0
    %1497 = vmatpush1.msra.mxu0 0.0
    %1498 = vmatprep.subr.mxu0 0.0
    %1499 = vmatpush1.msra.mxu0 0.0
    %1500 = vmatprep.subr.mxu0 0.0
    %1501 = vmatpush1.msra.mxu0 0.0
    %1502 = vmatprep.subr.mxu0 0.0
    %1503 = vmatpush1.msra.mxu0 0.0
    %1504 = vmatprep.subr.mxu0 0.0
    %1505 = vmatpush1.msra.mxu0 0.0
    %1506 = vmatprep.subr.mxu0 0.0
    %1507 = vmatpush1.msra.mxu0 0.0
    %1508 = vmatprep.subr.mxu0 0.0
    %1509 = vmatpush1.msra.mxu0 0.0
    %1510 = vmatprep.subr.mxu0 0.0
    %1511 = vmatpush1.msra.mxu0 0.0
    %1512 = vmatprep.subr.mxu0 0.0
    %1513 = vmatpush1.msra.mxu0 0.0
    %1514 = vmatprep.subr.mxu0 0.0
    %1515 = vmatpush1.msra.mxu0 0.0
    %1516 = vmatprep.subr.mxu0 0.0
    %1517 = vmatpush1.msra.mxu0 0.0
    %1518 = vmatprep.subr.mxu0 0.0
    %1519 = vmatpush1.msra.mxu0 0.0
    %1520 = vmatprep.subr.mxu0 0.0
    %1521 = vmatpush1.msra.mxu0 0.0
    %1522 = vmatprep.subr.mxu0 0.0
    %1523 = vmatpush1.msra.mxu0 0.0
    %1524 = vmatprep.subr.mxu0 0.0
    %1525 = vmatpush1.msra.mxu0 0.0
    %1526 = vmatprep.subr.mxu0 0.0
    %1527 = vmatpush1.msra.mxu0 0.0
    %1528 = vmatprep.subr.mxu0 0.0
    %1529 = vmatpush1.msra.mxu0 0.0
    %1530 = vmatprep.subr.mxu0 0.0
    %1531 = vmatpush1.msra.mxu0 0.0
    %1532 = vmatprep.mubr.f32.mxu0 0.0
    %1533 = vmatmul.mubr.f32.gmra.mrb[0].mxu0 %v1463
    %v1534 = vpop.f32.mrb[0].mxu0
    %v1535 = vadd.f32 0.0, %v1534
    %v1536 = vpop.f32.mrb[0].mxu0
    %1537 = vmatprep.mubr.f32.mxu0 0.0
    %1538 = vmatmul.mubr.f32.gmra.mrb[0].mxu0 %v1466
    %v1539 = vpop.f32.mrb[0].mxu0
    %v1540 = vadd.f32 0.0, %v1539
    %v1541 = vpop.f32.mrb[0].mxu0
    %1542 = vdwg.mxu0
    %v1544 = vsel %vm1211, %v1298, 0
    %v1547 = vsel %vm1211, %v1299, 0
    %1549 = vmatprep.subr.mxu0 0.0
    %1550 = vmatpush1.msra.mxu0 %v843
    %1551 = vmatprep.subr.mxu0 0.0
    %1552 = vmatpush1.msra.mxu0 %v844
    %1553 = vmatprep.subr.mxu0 0.0
    %1554 = vmatpush1.msra.mxu0 0.0
    %1555 = vmatprep.subr.mxu0 0.0
    %1556 = vmatpush1.msra.mxu0 0.0
    %1557 = vmatprep.subr.mxu0 0.0
    %1558 = vmatpush1.msra.mxu0 0.0
    %1559 = vmatprep.subr.mxu0 0.0
    %1560 = vmatpush1.msra.mxu0 0.0
    %1561 = vmatprep.subr.mxu0 0.0
    %1562 = vmatpush1.msra.mxu0 0.0
    %1563 = vmatprep.subr.mxu0 0.0
    %1564 = vmatpush1.msra.mxu0 0.0
    %1565 = vmatprep.subr.mxu0 0.0
    %1566 = vmatpush1.msra.mxu0 0.0
    %1567 = vmatprep.subr.mxu0 0.0
    %1568 = vmatpush1.msra.mxu0 0.0
    %1569 = vmatprep.subr.mxu0 0.0
    %1570 = vmatpush1.msra.mxu0 0.0
    %1571 = vmatprep.subr.mxu0 0.0
    %1572 = vmatpush1.msra.mxu0 0.0
    %1573 = vmatprep.subr.mxu0 0.0
    %1574 = vmatpush1.msra.mxu0 0.0
    %1575 = vmatprep.subr.mxu0 0.0
    %1576 = vmatpush1.msra.mxu0 0.0
    %1577 = vmatprep.subr.mxu0 0.0
    %1578 = vmatpush1.msra.mxu0 0.0
    %1579 = vmatprep.subr.mxu0 0.0
    %1580 = vmatpush1.msra.mxu0 0.0
    %1581 = vmatprep.subr.mxu0 0.0
    %1582 = vmatpush1.msra.mxu0 0.0
    %1583 = vmatprep.subr.mxu0 0.0
    %1584 = vmatpush1.msra.mxu0 0.0
    %1585 = vmatprep.subr.mxu0 0.0
    %1586 = vmatpush1.msra.mxu0 0.0
    %1587 = vmatprep.subr.mxu0 0.0
    %1588 = vmatpush1.msra.mxu0 0.0
    %1589 = vmatprep.subr.mxu0 0.0
    %1590 = vmatpush1.msra.mxu0 0.0
    %1591 = vmatprep.subr.mxu0 0.0
    %1592 = vmatpush1.msra.mxu0 0.0
    %1593 = vmatprep.subr.mxu0 0.0
    %1594 = vmatpush1.msra.mxu0 0.0
    %1595 = vmatprep.subr.mxu0 0.0
    %1596 = vmatpush1.msra.mxu0 0.0
    %1597 = vmatprep.subr.mxu0 0.0
    %1598 = vmatpush1.msra.mxu0 0.0
    %1599 = vmatprep.subr.mxu0 0.0
    %1600 = vmatpush1.msra.mxu0 0.0
    %1601 = vmatprep.subr.mxu0 0.0
    %1602 = vmatpush1.msra.mxu0 0.0
    %1603 = vmatprep.subr.mxu0 0.0
    %1604 = vmatpush1.msra.mxu0 0.0
    %1605 = vmatprep.subr.mxu0 0.0
    %1606 = vmatpush1.msra.mxu0 0.0
    %1607 = vmatprep.subr.mxu0 0.0
    %1608 = vmatpush1.msra.mxu0 0.0
    %1609 = vmatprep.subr.mxu0 0.0
    %1610 = vmatpush1.msra.mxu0 0.0
    %1611 = vmatprep.subr.mxu0 0.0
    %1612 = vmatpush1.msra.mxu0 0.0
    %1613 = vmatprep.mubr.f32.mxu0 0.0
    %1614 = vmatmul.mubr.f32.gmra.mrb[0].mxu0 %v1544
    %v1615 = vpop.f32.mrb[0].mxu0
    %v1616 = vadd.f32 0.0, %v1615
    %v1617 = vpop.f32.mrb[0].mxu0
    %1618 = vmatprep.mubr.f32.mxu0 0.0
    %1619 = vmatmul.mubr.f32.gmra.mrb[0].mxu0 %v1547
    %v1620 = vpop.f32.mrb[0].mxu0
    %v1621 = vadd.f32 0.0, %v1620
    %v1622 = vpop.f32.mrb[0].mxu0
    %1623 = vdwg.mxu0
    %v1624 = vsel %vm100, %v1373, 0.0
    %v1625 = vsel %vm100, %v1454, 0.0
    %v1626 = vadd.f32 %v1624, %v1625
    %v1627 = vsel %vm100, %v1535, 0.0
    %v1628 = vadd.f32 %v1626, %v1627
    %v1629 = vsel %vm100, %v1616, 0.0
    %v1630 = vadd.f32 %v1628, %v1629
    %v1631 = vsel %vm100, %v1378, 0.0
    %v1632 = vsel %vm100, %v1459, 0.0
    %v1633 = vadd.f32 %v1631, %v1632
    %v1634 = vsel %vm100, %v1540, 0.0
    %v1635 = vadd.f32 %v1633, %v1634
    %v1636 = vsel %vm100, %v1621, 0.0
    %v1637 = vadd.f32 %v1635, %v1636
    %v1638 = vpack.c.bf16 %v1637, %v1630
    %v1639 = vld [vmem:[%s8] sm:$0xf]
    %v1640 = vld [vmem:[%s8 + $0x4] sm:$0xf]
    %v1641 = vld [vmem:[%s8 + $0x8] sm:$0xf]
    %v1642 = vld [vmem:[%s8 + $0xc] sm:$0xf]
    %v1647 = vunpack.c.l.b16 %v1639
    %v1648 = vunpack.c.l.b16 %v1640
    %v1649 = vunpack.c.l.b16 %v1641
    %v1650 = vunpack.c.l.b16 %v1642
    %v1651 = vpack.c.b16 %v1648, %v1647
    %v1652 = vpack.c.b16 %v1650, %v1649
    %v1656 = vsel %vm100, %v1638, 0
    %1658 = vmatprep.subr.bf16.mxu0 0
    %1659 = vmatpush1.bf16.msra.mxu0 %v1651
    %1660 = vmatprep.subr.bf16.mxu0 0
    %1661 = vmatpush1.bf16.msra.mxu0 %v1652
    %1662 = vmatprep.subr.bf16.mxu0 0
    %1663 = vmatpush1.bf16.msra.mxu0 0
    %1664 = vmatprep.subr.bf16.mxu0 0
    %1665 = vmatpush1.bf16.msra.mxu0 0
    %1666 = vmatprep.subr.bf16.mxu0 0
    %1667 = vmatpush1.bf16.msra.mxu0 0
    %1668 = vmatprep.subr.bf16.mxu0 0
    %1669 = vmatpush1.bf16.msra.mxu0 0
    %1670 = vmatprep.subr.bf16.mxu0 0
    %1671 = vmatpush1.bf16.msra.mxu0 0
    %1672 = vmatprep.subr.bf16.mxu0 0
    %1673 = vmatpush1.bf16.msra.mxu0 0
    %1674 = vmatprep.subr.bf16.mxu0 0
    %1675 = vmatpush1.bf16.msra.mxu0 0
    %1676 = vmatprep.subr.bf16.mxu0 0
    %1677 = vmatpush1.bf16.msra.mxu0 0
    %1678 = vmatprep.subr.bf16.mxu0 0
    %1679 = vmatpush1.bf16.msra.mxu0 0
    %1680 = vmatprep.subr.bf16.mxu0 0
    %1681 = vmatpush1.bf16.msra.mxu0 0
    %1682 = vmatprep.subr.bf16.mxu0 0
    %1683 = vmatpush1.bf16.msra.mxu0 0
    %1684 = vmatprep.subr.bf16.mxu0 0
    %1685 = vmatpush1.bf16.msra.mxu0 0
    %1686 = vmatprep.subr.bf16.mxu0 0
    %1687 = vmatpush1.bf16.msra.mxu0 0
    %1688 = vmatprep.subr.bf16.mxu0 0
    %1689 = vmatpush1.bf16.msra.mxu0 0
    %1690 = vmatprep.mubr.bf16.mxu0 0
    %1691 = vmatmul.mubr.bf16.gmra.mrb[0].mxu0 %v1656
    %v1692 = vpop.f32.mrb[0].mxu0
    %v1693 = vadd.f32 0.0, %v1692
    %v1694 = vpop.f32.mrb[0].mxu0
    %v1695 = vpop.f32.mrb[0].mxu0
    %v1696 = vadd.f32 0.0, %v1695
    %v1697 = vpop.f32.mrb[0].mxu0
    %1698 = vdwg.mxu0
    %v1699 = vadd.f32 %v408, %v1693
    %v1700 = vadd.f32 %v409, %v1696
    %v1701 = vmul.f32 %v1699, %v1699
    %v1702 = vmul.f32 %v1700, %v1700
    %v1703 = vsel %vm100, %v1701, 0.0
    %1704 = vadd.xlane.f32.xlu0 %v1703
    %v1705 = vpop.xlane.xlu0 %1704
    %v1706 = vsel %vm100, %v1702, 0.0
    %1707 = vadd.xlane.f32.xlu0 %v1706
    %v1708 = vpop.xlane.xlu0 %1707
    %v1709 = vmul.f32 %v1705, %v418
    %v1710 = vmul.f32 %v1708, %v418
    %v1711 = vadd.f32 %v1709, 1e-06
    %v1712 = vadd.f32 %v1710, 1e-06
    %v1713 = vrsqrt.pop %v1711
    %v1714 = vrsqrt.pop %v1712
    %v1715 = vmul.f32 %v1699, %v1713
    %v1716 = vmul.f32 %v1700, %v1714
    %v1717 = vld [vmem:[#allocation5] sm:$0x1]
    %v1719 = vlaneseq
    %v1720 = vshrl.u32 %v1719, 7
    %v1721 = vsub.s32 0, %v1720
    %v1722 = vrot.slane %v1717, %v1721
    %v1724 = vmul.f32 %v1715, %v1722
    %v1725 = vmul.f32 %v1716, %v1722
    %v1726 = vpack.c.bf16 %v1725, %v1724
    %v1727 = vld [vmem:[%s9] sm:$0xf]
    %v1728 = vld [vmem:[%s9 + $0x4] sm:$0xf]
    %v1729 = vld [vmem:[%s9 + $0x8] sm:$0xf]
    %v1730 = vld [vmem:[%s9 + $0xc] sm:$0xf]
    %v1735 = vunpack.c.l.b16 %v1727
    %v1736 = vunpack.c.l.b16 %v1728
    %v1737 = vunpack.c.l.b16 %v1729
    %v1738 = vunpack.c.l.b16 %v1730
    %v1739 = vpack.c.b16 %v1736, %v1735
    %v1740 = vpack.c.b16 %v1738, %v1737
    %v1744 = vsel %vm100, %v1726, 0
    %1746 = vmatprep.subr.bf16.mxu0 0
    %1747 = vmatpush1.bf16.msra.mxu0 %v1739
    %1748 = vmatprep.subr.bf16.mxu0 0
    %1749 = vmatpush1.bf16.msra.mxu0 %v1740
    %1750 = vmatprep.subr.bf16.mxu0 0
    %1751 = vmatpush1.bf16.msra.mxu0 0
    %1752 = vmatprep.subr.bf16.mxu0 0
    %1753 = vmatpush1.bf16.msra.mxu0 0
    %1754 = vmatprep.subr.bf16.mxu0 0
    %1755 = vmatpush1.bf16.msra.mxu0 0
    %1756 = vmatprep.subr.bf16.mxu0 0
    %1757 = vmatpush1.bf16.msra.mxu0 0
    %1758 = vmatprep.subr.bf16.mxu0 0
    %1759 = vmatpush1.bf16.msra.mxu0 0
    %1760 = vmatprep.subr.bf16.mxu0 0
    %1761 = vmatpush1.bf16.msra.mxu0 0
    %1762 = vmatprep.subr.bf16.mxu0 0
    %1763 = vmatpush1.bf16.msra.mxu0 0
    %1764 = vmatprep.subr.bf16.mxu0 0
    %1765 = vmatpush1.bf16.msra.mxu0 0
    %1766 = vmatprep.subr.bf16.mxu0 0
    %1767 = vmatpush1.bf16.msra.mxu0 0
    %1768 = vmatprep.subr.bf16.mxu0 0
    %1769 = vmatpush1.bf16.msra.mxu0 0
    %1770 = vmatprep.subr.bf16.mxu0 0
    %1771 = vmatpush1.bf16.msra.mxu0 0
    %1772 = vmatprep.subr.bf16.mxu0 0
    %1773 = vmatpush1.bf16.msra.mxu0 0
    %1774 = vmatprep.subr.bf16.mxu0 0
    %1775 = vmatpush1.bf16.msra.mxu0 0
    %1776 = vmatprep.subr.bf16.mxu0 0
    %1777 = vmatpush1.bf16.msra.mxu0 0
    %1778 = vmatprep.mubr.bf16.mxu0 0
    %1779 = vmatmul.mubr.bf16.gmra.mrb[0].mxu0 %v1744
    %v1780 = vpop.f32.mrb[0].mxu0
    %v1781 = vadd.f32 0.0, %v1780
    %v1782 = vpop.f32.mrb[0].mxu0
    %v1783 = vpop.f32.mrb[0].mxu0
    %v1784 = vadd.f32 0.0, %v1783
    %v1785 = vpop.f32.mrb[0].mxu0
    %1786 = vdwg.mxu0
    %v1787 = vld [vmem:[%s10] sm:$0xf]
    %v1788 = vld [vmem:[%s10 + $0x4] sm:$0xf]
    %v1789 = vld [vmem:[%s10 + $0x8] sm:$0xf]
    %v1790 = vld [vmem:[%s10 + $0xc] sm:$0xf]
    %v1795 = vunpack.c.l.b16 %v1787
    %v1796 = vunpack.c.l.b16 %v1788
    %v1797 = vunpack.c.l.b16 %v1789
    %v1798 = vunpack.c.l.b16 %v1790
    %v1799 = vpack.c.b16 %v1796, %v1795
    %v1800 = vpack.c.b16 %v1798, %v1797
    %1803 = vmatprep.subr.bf16.mxu0 0
    %1804 = vmatpush1.bf16.msra.mxu0 %v1799
    %1805 = vmatprep.subr.bf16.mxu0 0
    %1806 = vmatpush1.bf16.msra.mxu0 %v1800
    %1807 = vmatprep.subr.bf16.mxu0 0
    %1808 = vmatpush1.bf16.msra.mxu0 0
    %1809 = vmatprep.subr.bf16.mxu0 0
    %1810 = vmatpush1.bf16.msra.mxu0 0
    %1811 = vmatprep.subr.bf16.mxu0 0
    %1812 = vmatpush1.bf16.msra.mxu0 0
    %1813 = vmatprep.subr.bf16.mxu0 0
    %1814 = vmatpush1.bf16.msra.mxu0 0
    %1815 = vmatprep.subr.bf16.mxu0 0
    %1816 = vmatpush1.bf16.msra.mxu0 0
    %1817 = vmatprep.subr.bf16.mxu0 0
    %1818 = vmatpush1.bf16.msra.mxu0 0
    %1819 = vmatprep.subr.bf16.mxu0 0
    %1820 = vmatpush1.bf16.msra.mxu0 0
    %1821 = vmatprep.subr.bf16.mxu0 0
    %1822 = vmatpush1.bf16.msra.mxu0 0
    %1823 = vmatprep.subr.bf16.mxu0 0
    %1824 = vmatpush1.bf16.msra.mxu0 0
    %1825 = vmatprep.subr.bf16.mxu0 0
    %1826 = vmatpush1.bf16.msra.mxu0 0
    %1827 = vmatprep.subr.bf16.mxu0 0
    %1828 = vmatpush1.bf16.msra.mxu0 0
    %1829 = vmatprep.subr.bf16.mxu0 0
    %1830 = vmatpush1.bf16.msra.mxu0 0
    %1831 = vmatprep.subr.bf16.mxu0 0
    %1832 = vmatpush1.bf16.msra.mxu0 0
    %1833 = vmatprep.subr.bf16.mxu0 0
    %1834 = vmatpush1.bf16.msra.mxu0 0
    %1835 = vmatprep.mubr.bf16.mxu0 0
    %1836 = vmatmul.mubr.bf16.gmra.mrb[0].mxu0 %v1744
    %v1837 = vpop.f32.mrb[0].mxu0
    %v1838 = vadd.f32 0.0, %v1837
    %v1839 = vpop.f32.mrb[0].mxu0
    %v1840 = vpop.f32.mrb[0].mxu0
    %v1841 = vadd.f32 0.0, %v1840
    %v1842 = vpop.f32.mrb[0].mxu0
    %1843 = vdwg.mxu0
    %v1844 = vxor.u32 %v1781, 2147483648
    %v1845 = vxor.u32 %v1784, 2147483648
    %v1846 = vmul.f32 %v1844, 1.442695
    %v1847 = vpow.pop %v1846
    %v1848 = vmul.f32 %v1845, 1.442695
    %v1849 = vpow.pop %v1848
    %v1850 = vadd.f32 %v1847, 1.0
    %v1851 = vadd.f32 %v1849, 1.0
    %v1852 = vrcp.pop %v1850
    %v1853 = vmul.f32 1.0, %v1852
    %v1854 = vrcp.pop %v1851
    %v1855 = vmul.f32 1.0, %v1854
    %v1856 = vmul.f32 %v1781, %v1853
    %v1857 = vmul.f32 %v1784, %v1855
    %v1858 = vmul.f32 %v1856, %v1838
    %v1859 = vmul.f32 %v1857, %v1841
    %v1860 = vpack.c.bf16 %v1859, %v1858
    %v1861 = vld [vmem:[%s11] sm:$0xf]
    %v1862 = vld [vmem:[%s11 + $0x4] sm:$0xf]
    %v1863 = vld [vmem:[%s11 + $0x8] sm:$0xf]
    %v1864 = vld [vmem:[%s11 + $0xc] sm:$0xf]
    %v1865 = vld [vmem:[%s11 + $0x10] sm:$0xf]
    %v1866 = vld [vmem:[%s11 + $0x14] sm:$0xf]
    %v1867 = vld [vmem:[%s11 + $0x18] sm:$0xf]
    %v1868 = vld [vmem:[%s11 + $0x1c] sm:$0xf]
    %v1877 = vunpack.c.l.b16 %v1861
    %v1878 = vunpack.c.l.b16 %v1862
    %v1879 = vunpack.c.l.b16 %v1863
    %v1880 = vunpack.c.l.b16 %v1864
    %v1881 = vunpack.c.l.b16 %v1865
    %v1882 = vunpack.c.l.b16 %v1866
    %v1883 = vunpack.c.l.b16 %v1867
    %v1884 = vunpack.c.l.b16 %v1868
    %v1885 = vpack.c.b16 %v1878, %v1877
    %v1886 = vpack.c.b16 %v1880, %v1879
    %v1887 = vpack.c.b16 %v1882, %v1881
    %v1888 = vpack.c.b16 %v1884, %v1883
    %vm1893 = vcmask 523264
    %v1895 = vsel %vm1893, %v1860, 0
    %1897 = vmatprep.subr.bf16.mxu0 0
    %1898 = vmatpush1.bf16.msra.mxu0 %v1885
    %1899 = vmatprep.subr.bf16.mxu0 0
    %1900 = vmatpush1.bf16.msra.mxu0 %v1886
    %1901 = vmatprep.subr.bf16.mxu0 0
    %1902 = vmatpush1.bf16.msra.mxu0 %v1887
    %1903 = vmatprep.subr.bf16.mxu0 0
    %1904 = vmatpush1.bf16.msra.mxu0 %v1888
    %1905 = vmatprep.subr.bf16.mxu0 0
    %1906 = vmatpush1.bf16.msra.mxu0 0
    %1907 = vmatprep.subr.bf16.mxu0 0
    %1908 = vmatpush1.bf16.msra.mxu0 0
    %1909 = vmatprep.subr.bf16.mxu0 0
    %1910 = vmatpush1.bf16.msra.mxu0 0
    %1911 = vmatprep.subr.bf16.mxu0 0
    %1912 = vmatpush1.bf16.msra.mxu0 0
    %1913 = vmatprep.subr.bf16.mxu0 0
    %1914 = vmatpush1.bf16.msra.mxu0 0
    %1915 = vmatprep.subr.bf16.mxu0 0
    %1916 = vmatpush1.bf16.msra.mxu0 0
    %1917 = vmatprep.subr.bf16.mxu0 0
    %1918 = vmatpush1.bf16.msra.mxu0 0
    %1919 = vmatprep.subr.bf16.mxu0 0
    %1920 = vmatpush1.bf16.msra.mxu0 0
    %1921 = vmatprep.subr.bf16.mxu0 0
    %1922 = vmatpush1.bf16.msra.mxu0 0
    %1923 = vmatprep.subr.bf16.mxu0 0
    %1924 = vmatpush1.bf16.msra.mxu0 0
    %1925 = vmatprep.subr.bf16.mxu0 0
    %1926 = vmatpush1.bf16.msra.mxu0 0
    %1927 = vmatprep.subr.bf16.mxu0 0
    %1928 = vmatpush1.bf16.msra.mxu0 0
    %1929 = vmatprep.mubr.bf16.mxu0 0
    %1930 = vmatmul.mubr.bf16.gmra.mrb[0].mxu0 %v1895
    %v1931 = vpop.f32.mrb[0].mxu0
    %v1932 = vadd.f32 0.0, %v1931
    %v1933 = vpop.f32.mrb[0].mxu0
    %v1934 = vpop.f32.mrb[0].mxu0
    %v1935 = vadd.f32 0.0, %v1934
    %v1936 = vpop.f32.mrb[0].mxu0
    %1937 = vdwg.mxu0
    %v1938 = vadd.f32 %v1699, %v1932
    %v1939 = vadd.f32 %v1700, %v1935
    %1940 = vst.msk [vmem:[#allocation7] sm:$0xff] %vm100, %v1938
    %1941 = vst.msk [vmem:[#allocation7 + $0x8] sm:$0xff] %vm100, %v1939
    // Predicated region
    $region78: #{memorizing_decoder_forward.1} parent=1 // pred_check
      _
    $region79: #{memorizing_decoder_forward.1} parent=1 // pred_check_branch
      %1943 = sbr.rel (0) target = $region81
    $region80: #{memorizing_decoder_forward.1} parent=1 // pred_region
      %s1945 = ssub.s32 256, 256
      %1946 = vsyncadd [#allocation4], %s1945
      %s1947 = sshll.u32 [#allocation7], 4
      %s1948 = int_to_ptr.vmem [resolvable:$true] %s1947
      %1953 = dma.vmem_to_hbm [thread:$0]  %s1948, 256, %s17, [#allocation4], 128, 128, 8
    $region81: #{memorizing_decoder_forward.1} parent=1 // pred_fallthru
      _
    // Predicated region
    $region82: #{memorizing_decoder_forward.1} parent=1 // pred_check
      _
    $region83: #{memorizing_decoder_forward.1} parent=1 // pred_check_branch
      %1955 = sbr.rel (0) target = $region85
    $region84: #{memorizing_decoder_forward.1} parent=1 // pred_region
      %1956 = dma.done [#allocation4], 256
    $region85: #{memorizing_decoder_forward.1} parent=1 // pred_fallthru
      _
    %1957 = vsyncpa [#allocation3], 1
    %1958 = vsyncpa [#allocation6], 1
    %1959 = vsyncpa [#allocation4], 1

</llo_original>
